<compile_context>
chip_gen: v6e
topology: v6e:2x2x1
jax: 0.10.0
libtpu: 0.0.40
codegen_flags: <defaults>
</compile_context>

<pallas_src>
import jax
import jax.numpy as jnp
from jax import lax
from jax.experimental import pallas as pl
from jax.experimental.pallas import tpu as pltpu

# --- hyperparameters implied by register_vars / the bottleneck head ---
MODEL_DEPTH = 4
C_IN = MODEL_DEPTH * 8          # 32  (GroupNorm channels, Conv3d in-channels)
C_OUT = MODEL_DEPTH // 2        # 2   (Conv3d out-channels)
N_GROUPS = 8
CPG = C_IN // N_GROUPS          # 4 channels per group
HIDDEN = 2640                   # intermediate_vec
HIDDEN_PAD = 2688               # 21 * 128 -> lane-dense output stores
TILE_N = 384                    # 3 * 128-lane column tile; 2688 = 7 * 384
N_TILES = HIDDEN_PAD // TILE_N  # 7
EPS = 1e-5                      # nn.GroupNorm default
NEG_SLOPE = 0.01                # nn.LeakyReLU default


# --------------------------- fused Pallas kernel ---------------------------
def _fused_kernel(x_ref, gamma_ref, beta_ref, w_ref, scale_ref, b_ref, o_ref):
    """GroupNorm + LeakyReLU + folded (conv+flatten+linear) GEMM column tile.

    x_ref    : (B, G, GS)   f32   GS = CPG * S (lane-dense; grid-invariant)
    gamma_ref: (1, G, GS)   f32   GroupNorm weight, pre-broadcast (grid-invariant)
    beta_ref : (1, G, GS)   f32   GroupNorm bias,   pre-broadcast (grid-invariant)
    w_ref    : (G, GS, TN)  int8  folded conv+linear weight column tile
    scale_ref: (1, TN)      f32   per-output-column dequant scale
    b_ref    : (1, TN)      f32   folded bias column tile
    o_ref    : (B, TN)      f32
    """
    # GroupNorm + LeakyReLU (recomputed per tile: ~4K elements, hidden under
    # the per-tile weight DMA; see header for why it is not hoisted).
    x = x_ref[...]                                            # (B, G, GS)
    mean = jnp.mean(x, axis=-1, keepdims=True)                # (B, G, 1)
    var = jnp.mean((x - mean) ** 2, axis=-1, keepdims=True)   # biased (torch GN)
    y = (x - mean) * lax.rsqrt(var + EPS)
    y = y * gamma_ref[...] + beta_ref[...]
    y = jnp.where(y >= 0, y, NEG_SLOPE * y)                   # LeakyReLU
    yb = y.astype(jnp.bfloat16)

    # GEMM against the int8 column tile (dequant to bf16 on the VPU, f32 acc,
    # per-column scale folded into the accumulator before the bias add).
    acc = jnp.zeros(o_ref.shape, jnp.float32)
    for g in range(N_GROUPS):                                 # static, unrolled
        wg = w_ref[g].astype(jnp.float32).astype(jnp.bfloat16)   # (GS, TN)
        acc = acc + jnp.dot(yb[:, g, :], wg,                     # (B,GS)@(GS,TN)
                            preferred_element_type=jnp.float32)
    o_ref[...] = acc * scale_ref[...] + b_ref[...]


# ------------------------- parameter preprocessing -------------------------
def prepare_params(params, spatial):
    """Fold Conv3d+Flatten+Linear into one GEMM, quantize it, layout GN affine."""
    D, H, W = spatial
    S = D * H * W
    K = C_IN * S                     # 2048 for S=64
    GS = CPG * S                     # 256  for S=64

    f32 = jnp.float32
    gn_w = params["gn_weight"].astype(f32)
    gn_b = params["gn_bias"].astype(f32)
    conv_w = params["conv_weight"].astype(f32)     # (C_OUT, C_IN, 3, 3, 3)
    conv_b = params["conv_bias"].astype(f32)       # (C_OUT,)
    lin_w = params["lin_weight"].astype(f32)       # (HIDDEN, C_OUT*S)
    lin_b = params["lin_bias"].astype(f32)         # (HIDDEN,)

    # GroupNorm affine, broadcast into the (1, G, CPG*S) kernel layout.
    gamma = jnp.repeat(gn_w, S).reshape(1, N_GROUPS, GS)
    beta = jnp.repeat(gn_b, S).reshape(1, N_GROUPS, GS)

    # Conv3d is linear -> build its matrix by convolving an identity batch,
    # then fold it (and its bias) through the Linear.  One-time, host/compile
    # side only (cost grows as (C_IN*S)^2; fine at S=64).
    eye = jnp.eye(K, dtype=f32).reshape(K, C_IN, D, H, W)
    resp = lax.conv_general_dilated(
        eye, conv_w, window_strides=(1, 1, 1),
        padding=((1, 1), (1, 1), (1, 1)),
        dimension_numbers=("NCDHW", "OIDHW", "NCDHW"),
        precision=lax.Precision.HIGHEST)
    conv_mat = resp.reshape(K, C_OUT * S)                         # [in_flat, out_flat]
    w_eff = jnp.dot(conv_mat, lin_w.T, precision=lax.Precision.HIGHEST)   # (K, HIDDEN)
    b_eff = jnp.dot(jnp.repeat(conv_b, S), lin_w.T,
                    precision=lax.Precision.HIGHEST) + lin_b              # (HIDDEN,)

    # Pad HIDDEN -> 2688 (21*128) and quantize the GEMM weight to int8 with
    # per-output-column scales (symmetric).  Padded columns are all-zero.
    w_pad = jnp.zeros((K, HIDDEN_PAD), f32).at[:, :HIDDEN].set(w_eff)
    b_pad = jnp.zeros((1, HIDDEN_PAD), f32).at[:, :HIDDEN].set(b_eff)
    amax = jnp.max(jnp.abs(w_pad), axis=0)                        # (HIDDEN_PAD,)
    scale = jnp.maximum(amax, 1e-12) / 127.0
    w_q = jnp.clip(jnp.round(w_pad / scale[None, :]), -127.0, 127.0).astype(jnp.int8)

    return {
        "gamma": gamma,
        "beta": beta,
        "w": w_q.reshape(N_GROUPS, GS, HIDDEN_PAD),               # int8
        "w_scale": scale.reshape(1, HIDDEN_PAD).astype(f32),
        "b": b_pad,
    }


# ------------------------------ forward glue -------------------------------
def bottleneck_in_forward(x, prep):
    """Returns the lane-dense padded (B, HIDDEN_PAD) activation; columns
    HIDDEN..HIDDEN_PAD-1 are exactly zero (slice off downstream if needed)."""
    B = x.shape[0]
    S = x.shape[2] * x.shape[3] * x.shape[4]
    GS = CPG * S
    xg = x.reshape(B, N_GROUPS, GS).astype(jnp.float32)   # contiguous, free reshape

    # TODO(synk): if callers ever run with much larger batch, add an M (batch)
    # grid axis tiled to the MXU height instead of growing this single block.
    return pl.pallas_call(
        _fused_kernel,
        out_shape=jax.ShapeDtypeStruct((B, HIDDEN_PAD), jnp.float32),
        grid=(N_TILES,),                                  # tile over output columns
        in_specs=[
            pl.BlockSpec((B, N_GROUPS, GS), lambda n: (0, 0, 0)),        # grid-invariant
            pl.BlockSpec((1, N_GROUPS, GS), lambda n: (0, 0, 0)),        # grid-invariant
            pl.BlockSpec((1, N_GROUPS, GS), lambda n: (0, 0, 0)),        # grid-invariant
            pl.BlockSpec((N_GROUPS, GS, TILE_N), lambda n: (0, 0, n)),   # weight tile
            pl.BlockSpec((1, TILE_N), lambda n: (0, n)),                 # scale tile
            pl.BlockSpec((1, TILE_N), lambda n: (0, n)),                 # bias tile
        ],
        out_specs=pl.BlockSpec((B, TILE_N), lambda n: (0, n)),
        compiler_params=pltpu.CompilerParams(
            dimension_semantics=("parallel",)),            # v7x: split N over 2 TCs
    )(xg, prep["gamma"], prep["beta"], prep["w"], prep["w_scale"], prep["b"])


# ---------------------------- pure-JAX reference ---------------------------
def reference_forward(x, params):
    B, C, D, H, W = x.shape
    cpg = C // N_GROUPS
    xg = x.reshape(B, N_GROUPS, cpg * D * H * W)
    mean = xg.mean(axis=2, keepdims=True)
    var = ((xg - mean) ** 2).mean(axis=2, keepdims=True)
    xn = ((xg - mean) / jnp.sqrt(var + EPS)).reshape(B, C, D, H, W)
    y = xn * params["gn_weight"][None, :, None, None, None] \
        + params["gn_bias"][None, :, None, None, None]
    y = jnp.where(y >= 0, y, NEG_SLOPE * y)
    conv = lax.conv_general_dilated(
        y, params["conv_weight"], window_strides=(1, 1, 1),
        padding=((1, 1), (1, 1), (1, 1)),
        dimension_numbers=("NCDHW", "OIDHW", "NCDHW"),
        precision=lax.Precision.HIGHEST)
    conv = conv + params["conv_bias"][None, :, None, None, None]
    flat = conv.reshape(B, -1)                 # torch Flatten: channel-major
    return jnp.dot(flat, params["lin_weight"].T,
                   precision=lax.Precision.HIGHEST) + params["lin_bias"]


if __name__ == "__main__":
    # shapes['dim_3'] chosen as (4, 4, 4) -> flat = 64 * (model_depth // 2) = 128,
    # so into_bert = Linear(128, 2640).
    B, D, H, W = 2, 4, 4, 4
    S = D * H * W

    key = jax.random.PRNGKey(0)
    kx, k1, k2, k3, k4, k5, k6 = jax.random.split(key, 7)
    x = jax.random.normal(kx, (B, C_IN, D, H, W), jnp.float32)

    params = {
        "gn_weight": 1.0 + 0.1 * jax.random.normal(k1, (C_IN,), jnp.float32),
        "gn_bias": 0.1 * jax.random.normal(k2, (C_IN,), jnp.float32),
        "conv_weight": 0.05 * jax.random.normal(k3, (C_OUT, C_IN, 3, 3, 3), jnp.float32),
        "conv_bias": 0.05 * jax.random.normal(k4, (C_OUT,), jnp.float32),
        "lin_weight": 0.05 * jax.random.normal(k5, (HIDDEN, C_OUT * S), jnp.float32),
        "lin_bias": 0.05 * jax.random.normal(k6, (HIDDEN,), jnp.float32),
    }

    prep = prepare_params(params, (D, H, W))            # one-time weight folding+quant
    fwd = jax.jit(bottleneck_in_forward)
    out_pad = jax.block_until_ready(fwd(x, prep))
    assert out_pad.shape == (B, HIDDEN_PAD), out_pad.shape

    # Comparison site only: consumers may take the padded slab directly.
    out = out_pad[:, :HIDDEN]
    ref = reference_forward(x, params)
    # Tolerance covers int8 per-column weight quantization + bf16 activations.
    if not jnp.allclose(out, ref, rtol=5e-2, atol=5e-2):
        raise AssertionError(
            f"mismatch: max abs err = {jnp.max(jnp.abs(out - ref)):.3e}")

    # TODO(synk): BaseModel's checkpoint/save/load + load_partial_state_dict are
    # host-side torch I/O and are intentionally not translated (not forward-pass).
    print("KERNEL_OK")
</pallas_src>

<mosaic_0001>
module attributes {stable_mosaic.version = 11 : i64} {
  func.func @_fused_kernel(%arg0: i32, %arg1: memref<2x8x256xf32, #tpu.memory_space<vmem>>, %arg2: memref<1x8x256xf32, #tpu.memory_space<vmem>>, %arg3: memref<1x8x256xf32, #tpu.memory_space<vmem>>, %arg4: memref<8x256x384xi8, #tpu.memory_space<vmem>>, %arg5: memref<1x384xf32, #tpu.memory_space<vmem>>, %arg6: memref<1x384xf32, #tpu.memory_space<vmem>>, %arg7: memref<2x384xf32, #tpu.memory_space<vmem>>) attributes {dimension_semantics = [#tpu.dimension_semantics<parallel>], iteration_bounds = array<i64: 7>, scalar_prefetch = 0 : i64, scratch_operands = 0 : i64, tpu.core_type = #tpu.core_type<tc>, window_params = [{pipeline_mode = #tpu.pipeline_mode<synchronous>, transform_indices = @transform_0, window_bounds = array<i64: 2, 8, 256>}, {pipeline_mode = #tpu.pipeline_mode<synchronous>, transform_indices = @transform_1, window_bounds = array<i64: 1, 8, 256>}, {pipeline_mode = #tpu.pipeline_mode<synchronous>, transform_indices = @transform_2, window_bounds = array<i64: 1, 8, 256>}, {transform_indices = @transform_3, window_bounds = array<i64: 8, 256, 384>}, {transform_indices = @transform_4, window_bounds = array<i64: 1, 384>}, {transform_indices = @transform_5, window_bounds = array<i64: 1, 384>}, {transform_indices = @transform_6, window_bounds = array<i64: 2, 384>}]} {
    %c0 = arith.constant 0 : index
    %c0_0 = arith.constant 0 : index
    %c0_1 = arith.constant 0 : index
    %0 = vector.load %arg1[%c0, %c0_0, %c0_1] : memref<2x8x256xf32, #tpu.memory_space<vmem>>, vector<2x8x256xf32>
    %cst = arith.constant dense<0.000000e+00> : vector<2x8xf32>
    %1 = vector.multi_reduction <add>, %0, %cst [2] : vector<2x8x256xf32> to vector<2x8xf32>
    %2 = vector.shape_cast %1 : vector<2x8xf32> to vector<2x8x1xf32>
    %cst_2 = arith.constant 2.560000e+02 : f32
    %3 = vector.broadcast %cst_2 : f32 to vector<2x8x1xf32>
    %4 = arith.divf %2, %3 : vector<2x8x1xf32>
    %5 = vector.broadcast %4 : vector<2x8x1xf32> to vector<2x8x256xf32>
    %6 = arith.subf %0, %5 : vector<2x8x256xf32>
    %7 = arith.mulf %6, %6 : vector<2x8x256xf32>
    %cst_3 = arith.constant dense<0.000000e+00> : vector<2x8xf32>
    %8 = vector.multi_reduction <add>, %7, %cst_3 [2] : vector<2x8x256xf32> to vector<2x8xf32>
    %9 = vector.shape_cast %8 : vector<2x8xf32> to vector<2x8x1xf32>
    %cst_4 = arith.constant 2.560000e+02 : f32
    %10 = vector.broadcast %cst_4 : f32 to vector<2x8x1xf32>
    %11 = arith.divf %9, %10 : vector<2x8x1xf32>
    %12 = vector.broadcast %4 : vector<2x8x1xf32> to vector<2x8x256xf32>
    %13 = arith.subf %0, %12 : vector<2x8x256xf32>
    %cst_5 = arith.constant 9.99999974E-6 : f32
    %14 = vector.broadcast %cst_5 : f32 to vector<2x8x1xf32>
    %15 = arith.addf %11, %14 : vector<2x8x1xf32>
    %16 = math.rsqrt %15 : vector<2x8x1xf32>
    %17 = vector.broadcast %16 : vector<2x8x1xf32> to vector<2x8x256xf32>
    %18 = arith.mulf %13, %17 : vector<2x8x256xf32>
    %c0_6 = arith.constant 0 : index
    %c0_7 = arith.constant 0 : index
    %c0_8 = arith.constant 0 : index
    %19 = vector.load %arg2[%c0_6, %c0_7, %c0_8] : memref<1x8x256xf32, #tpu.memory_space<vmem>>, vector<1x8x256xf32>
    %20 = vector.broadcast %19 : vector<1x8x256xf32> to vector<2x8x256xf32>
    %21 = arith.mulf %18, %20 : vector<2x8x256xf32>
    %c0_9 = arith.constant 0 : index
    %c0_10 = arith.constant 0 : index
    %c0_11 = arith.constant 0 : index
    %22 = vector.load %arg3[%c0_9, %c0_10, %c0_11] : memref<1x8x256xf32, #tpu.memory_space<vmem>>, vector<1x8x256xf32>
    %23 = vector.broadcast %22 : vector<1x8x256xf32> to vector<2x8x256xf32>
    %24 = arith.addf %21, %23 : vector<2x8x256xf32>
    %cst_12 = arith.constant 0.000000e+00 : f32
    %25 = vector.broadcast %cst_12 : f32 to vector<2x8x256xf32>
    %26 = arith.cmpf oge, %24, %25 : vector<2x8x256xf32>
    %cst_13 = arith.constant 0.00999999977 : f32
    %27 = vector.broadcast %cst_13 : f32 to vector<2x8x256xf32>
    %28 = arith.mulf %27, %24 : vector<2x8x256xf32>
    %29 = arith.select %26, %24, %28 : vector<2x8x256xi1>, vector<2x8x256xf32>
    %30 = arith.truncf %29 : vector<2x8x256xf32> to vector<2x8x256xbf16>
    %cst_14 = arith.constant 0.000000e+00 : f32
    %31 = vector.broadcast %cst_14 : f32 to vector<2x384xf32>
    %c0_15 = arith.constant 0 : index
    %c0_16 = arith.constant 0 : index
    %c0_17 = arith.constant 0 : index
    %32 = vector.load %arg4[%c0_15, %c0_16, %c0_17] : memref<8x256x384xi8, #tpu.memory_space<vmem>>, vector<1x256x384xi8>
    %33 = vector.shape_cast %32 : vector<1x256x384xi8> to vector<256x384xi8>
    %34 = arith.sitofp %33 : vector<256x384xi8> to vector<256x384xf32>
    %35 = arith.truncf %34 : vector<256x384xf32> to vector<256x384xbf16>
    %36 = vector.extract_strided_slice %30 {offsets = [0, 0, 0], sizes = [2, 1, 256], strides = [1, 1, 1]} : vector<2x8x256xbf16> to vector<2x1x256xbf16>
    %37 = vector.shape_cast %36 : vector<2x1x256xbf16> to vector<2x256xbf16>
    %cst_18 = arith.constant dense<0.000000e+00> : vector<2x384xf32>
    %38 = tpu.matmul %37, %35, %cst_18 {dimension_numbers = #tpu.dot_dimension_numbers<[1], [0], [0], [1], [0, 0, 1, 1], [], []>} : vector<2x256xbf16>, vector<256x384xbf16>, vector<2x384xf32> -> vector<2x384xf32>
    %39 = arith.addf %31, %38 : vector<2x384xf32>
    %c1 = arith.constant 1 : index
    %c0_19 = arith.constant 0 : index
    %c0_20 = arith.constant 0 : index
    %40 = vector.load %arg4[%c1, %c0_19, %c0_20] : memref<8x256x384xi8, #tpu.memory_space<vmem>>, vector<1x256x384xi8>
    %41 = vector.shape_cast %40 : vector<1x256x384xi8> to vector<256x384xi8>
    %42 = arith.sitofp %41 : vector<256x384xi8> to vector<256x384xf32>
    %43 = arith.truncf %42 : vector<256x384xf32> to vector<256x384xbf16>
    %44 = vector.extract_strided_slice %30 {offsets = [0, 1, 0], sizes = [2, 1, 256], strides = [1, 1, 1]} : vector<2x8x256xbf16> to vector<2x1x256xbf16>
    %45 = vector.shape_cast %44 : vector<2x1x256xbf16> to vector<2x256xbf16>
    %cst_21 = arith.constant dense<0.000000e+00> : vector<2x384xf32>
    %46 = tpu.matmul %45, %43, %cst_21 {dimension_numbers = #tpu.dot_dimension_numbers<[1], [0], [0], [1], [0, 0, 1, 1], [], []>} : vector<2x256xbf16>, vector<256x384xbf16>, vector<2x384xf32> -> vector<2x384xf32>
    %47 = arith.addf %39, %46 : vector<2x384xf32>
    %c2 = arith.constant 2 : index
    %c0_22 = arith.constant 0 : index
    %c0_23 = arith.constant 0 : index
    %48 = vector.load %arg4[%c2, %c0_22, %c0_23] : memref<8x256x384xi8, #tpu.memory_space<vmem>>, vector<1x256x384xi8>
    %49 = vector.shape_cast %48 : vector<1x256x384xi8> to vector<256x384xi8>
    %50 = arith.sitofp %49 : vector<256x384xi8> to vector<256x384xf32>
    %51 = arith.truncf %50 : vector<256x384xf32> to vector<256x384xbf16>
    %52 = vector.extract_strided_slice %30 {offsets = [0, 2, 0], sizes = [2, 1, 256], strides = [1, 1, 1]} : vector<2x8x256xbf16> to vector<2x1x256xbf16>
    %53 = vector.shape_cast %52 : vector<2x1x256xbf16> to vector<2x256xbf16>
    %cst_24 = arith.constant dense<0.000000e+00> : vector<2x384xf32>
    %54 = tpu.matmul %53, %51, %cst_24 {dimension_numbers = #tpu.dot_dimension_numbers<[1], [0], [0], [1], [0, 0, 1, 1], [], []>} : vector<2x256xbf16>, vector<256x384xbf16>, vector<2x384xf32> -> vector<2x384xf32>
    %55 = arith.addf %47, %54 : vector<2x384xf32>
    %c3 = arith.constant 3 : index
    %c0_25 = arith.constant 0 : index
    %c0_26 = arith.constant 0 : index
    %56 = vector.load %arg4[%c3, %c0_25, %c0_26] : memref<8x256x384xi8, #tpu.memory_space<vmem>>, vector<1x256x384xi8>
    %57 = vector.shape_cast %56 : vector<1x256x384xi8> to vector<256x384xi8>
    %58 = arith.sitofp %57 : vector<256x384xi8> to vector<256x384xf32>
    %59 = arith.truncf %58 : vector<256x384xf32> to vector<256x384xbf16>
    %60 = vector.extract_strided_slice %30 {offsets = [0, 3, 0], sizes = [2, 1, 256], strides = [1, 1, 1]} : vector<2x8x256xbf16> to vector<2x1x256xbf16>
    %61 = vector.shape_cast %60 : vector<2x1x256xbf16> to vector<2x256xbf16>
    %cst_27 = arith.constant dense<0.000000e+00> : vector<2x384xf32>
    %62 = tpu.matmul %61, %59, %cst_27 {dimension_numbers = #tpu.dot_dimension_numbers<[1], [0], [0], [1], [0, 0, 1, 1], [], []>} : vector<2x256xbf16>, vector<256x384xbf16>, vector<2x384xf32> -> vector<2x384xf32>
    %63 = arith.addf %55, %62 : vector<2x384xf32>
    %c4 = arith.constant 4 : index
    %c0_28 = arith.constant 0 : index
    %c0_29 = arith.constant 0 : index
    %64 = vector.load %arg4[%c4, %c0_28, %c0_29] : memref<8x256x384xi8, #tpu.memory_space<vmem>>, vector<1x256x384xi8>
    %65 = vector.shape_cast %64 : vector<1x256x384xi8> to vector<256x384xi8>
    %66 = arith.sitofp %65 : vector<256x384xi8> to vector<256x384xf32>
    %67 = arith.truncf %66 : vector<256x384xf32> to vector<256x384xbf16>
    %68 = vector.extract_strided_slice %30 {offsets = [0, 4, 0], sizes = [2, 1, 256], strides = [1, 1, 1]} : vector<2x8x256xbf16> to vector<2x1x256xbf16>
    %69 = vector.shape_cast %68 : vector<2x1x256xbf16> to vector<2x256xbf16>
    %cst_30 = arith.constant dense<0.000000e+00> : vector<2x384xf32>
    %70 = tpu.matmul %69, %67, %cst_30 {dimension_numbers = #tpu.dot_dimension_numbers<[1], [0], [0], [1], [0, 0, 1, 1], [], []>} : vector<2x256xbf16>, vector<256x384xbf16>, vector<2x384xf32> -> vector<2x384xf32>
    %71 = arith.addf %63, %70 : vector<2x384xf32>
    %c5 = arith.constant 5 : index
    %c0_31 = arith.constant 0 : index
    %c0_32 = arith.constant 0 : index
    %72 = vector.load %arg4[%c5, %c0_31, %c0_32] : memref<8x256x384xi8, #tpu.memory_space<vmem>>, vector<1x256x384xi8>
    %73 = vector.shape_cast %72 : vector<1x256x384xi8> to vector<256x384xi8>
    %74 = arith.sitofp %73 : vector<256x384xi8> to vector<256x384xf32>
    %75 = arith.truncf %74 : vector<256x384xf32> to vector<256x384xbf16>
    %76 = vector.extract_strided_slice %30 {offsets = [0, 5, 0], sizes = [2, 1, 256], strides = [1, 1, 1]} : vector<2x8x256xbf16> to vector<2x1x256xbf16>
    %77 = vector.shape_cast %76 : vector<2x1x256xbf16> to vector<2x256xbf16>
    %cst_33 = arith.constant dense<0.000000e+00> : vector<2x384xf32>
    %78 = tpu.matmul %77, %75, %cst_33 {dimension_numbers = #tpu.dot_dimension_numbers<[1], [0], [0], [1], [0, 0, 1, 1], [], []>} : vector<2x256xbf16>, vector<256x384xbf16>, vector<2x384xf32> -> vector<2x384xf32>
    %79 = arith.addf %71, %78 : vector<2x384xf32>
    %c6 = arith.constant 6 : index
    %c0_34 = arith.constant 0 : index
    %c0_35 = arith.constant 0 : index
    %80 = vector.load %arg4[%c6, %c0_34, %c0_35] : memref<8x256x384xi8, #tpu.memory_space<vmem>>, vector<1x256x384xi8>
    %81 = vector.shape_cast %80 : vector<1x256x384xi8> to vector<256x384xi8>
    %82 = arith.sitofp %81 : vector<256x384xi8> to vector<256x384xf32>
    %83 = arith.truncf %82 : vector<256x384xf32> to vector<256x384xbf16>
    %84 = vector.extract_strided_slice %30 {offsets = [0, 6, 0], sizes = [2, 1, 256], strides = [1, 1, 1]} : vector<2x8x256xbf16> to vector<2x1x256xbf16>
    %85 = vector.shape_cast %84 : vector<2x1x256xbf16> to vector<2x256xbf16>
    %cst_36 = arith.constant dense<0.000000e+00> : vector<2x384xf32>
    %86 = tpu.matmul %85, %83, %cst_36 {dimension_numbers = #tpu.dot_dimension_numbers<[1], [0], [0], [1], [0, 0, 1, 1], [], []>} : vector<2x256xbf16>, vector<256x384xbf16>, vector<2x384xf32> -> vector<2x384xf32>
    %87 = arith.addf %79, %86 : vector<2x384xf32>
    %c7 = arith.constant 7 : index
    %c0_37 = arith.constant 0 : index
    %c0_38 = arith.constant 0 : index
    %88 = vector.load %arg4[%c7, %c0_37, %c0_38] : memref<8x256x384xi8, #tpu.memory_space<vmem>>, vector<1x256x384xi8>
    %89 = vector.shape_cast %88 : vector<1x256x384xi8> to vector<256x384xi8>
    %90 = arith.sitofp %89 : vector<256x384xi8> to vector<256x384xf32>
    %91 = arith.truncf %90 : vector<256x384xf32> to vector<256x384xbf16>
    %92 = vector.extract_strided_slice %30 {offsets = [0, 7, 0], sizes = [2, 1, 256], strides = [1, 1, 1]} : vector<2x8x256xbf16> to vector<2x1x256xbf16>
    %93 = vector.shape_cast %92 : vector<2x1x256xbf16> to vector<2x256xbf16>
    %cst_39 = arith.constant dense<0.000000e+00> : vector<2x384xf32>
    %94 = tpu.matmul %93, %91, %cst_39 {dimension_numbers = #tpu.dot_dimension_numbers<[1], [0], [0], [1], [0, 0, 1, 1], [], []>} : vector<2x256xbf16>, vector<256x384xbf16>, vector<2x384xf32> -> vector<2x384xf32>
    %95 = arith.addf %87, %94 : vector<2x384xf32>
    %c0_40 = arith.constant 0 : index
    %c0_41 = arith.constant 0 : index
    %96 = vector.load %arg5[%c0_40, %c0_41] : memref<1x384xf32, #tpu.memory_space<vmem>>, vector<1x384xf32>
    %97 = vector.broadcast %96 : vector<1x384xf32> to vector<2x384xf32>
    %98 = arith.mulf %95, %97 : vector<2x384xf32>
    %c0_42 = arith.constant 0 : index
    %c0_43 = arith.constant 0 : index
    %99 = vector.load %arg6[%c0_42, %c0_43] : memref<1x384xf32, #tpu.memory_space<vmem>>, vector<1x384xf32>
    %100 = vector.broadcast %99 : vector<1x384xf32> to vector<2x384xf32>
    %101 = arith.addf %98, %100 : vector<2x384xf32>
    %c0_44 = arith.constant 0 : index
    %c0_45 = arith.constant 0 : index
    %102 = vector.load %arg7[%c0_44, %c0_45] : memref<2x384xf32, #tpu.memory_space<vmem>>, vector<2x384xf32>
    tpu.vector_store %arg7[%c0_44, %c0_45], %101 {strides = array<i32>} : memref<2x384xf32, #tpu.memory_space<vmem>>, vector<2x384xf32>,
    return
  }
  func.func @transform_0(%arg0: i32) -> (i32, i32, i32) {
    %c0_i32 = arith.constant 0 : i32
    %c0_i32_0 = arith.constant 0 : i32
    %c0_i32_1 = arith.constant 0 : i32
    %c0_i32_2 = arith.constant 0 : i32
    return %c0_i32, %c0_i32_0, %c0_i32_1 : i32, i32, i32
  }
  func.func @transform_1(%arg0: i32) -> (i32, i32, i32) {
    %c0_i32 = arith.constant 0 : i32
    %c0_i32_0 = arith.constant 0 : i32
    %c0_i32_1 = arith.constant 0 : i32
    %c0_i32_2 = arith.constant 0 : i32
    return %c0_i32, %c0_i32_0, %c0_i32_1 : i32, i32, i32
  }
  func.func @transform_2(%arg0: i32) -> (i32, i32, i32) {
    %c0_i32 = arith.constant 0 : i32
    %c0_i32_0 = arith.constant 0 : i32
    %c0_i32_1 = arith.constant 0 : i32
    %c0_i32_2 = arith.constant 0 : i32
    return %c0_i32, %c0_i32_0, %c0_i32_1 : i32, i32, i32
  }
  func.func @transform_3(%arg0: i32) -> (i32, i32, i32) {
    %c0_i32 = arith.constant 0 : i32
    %c0_i32_0 = arith.constant 0 : i32
    %c0_i32_1 = arith.constant 0 : i32
    return %c0_i32, %c0_i32_0, %arg0 : i32, i32, i32
  }
  func.func @transform_4(%arg0: i32) -> (i32, i32) {
    %c0_i32 = arith.constant 0 : i32
    %c0_i32_0 = arith.constant 0 : i32
    return %c0_i32, %arg0 : i32, i32
  }
  func.func @transform_5(%arg0: i32) -> (i32, i32) {
    %c0_i32 = arith.constant 0 : i32
    %c0_i32_0 = arith.constant 0 : i32
    return %c0_i32, %arg0 : i32, i32
  }
  func.func @transform_6(%arg0: i32) -> (i32, i32) {
    %c0_i32 = arith.constant 0 : i32
    %c0_i32_0 = arith.constant 0 : i32
    return %c0_i32, %arg0 : i32, i32
  }
}

</mosaic_0001>

<llo_original>
// kernel: bottleneck_in_forward.1
$region0: #{bottleneck_in_forward.1}
  #allocation0 [shape = 'u32[]', space=smem, size = 0x4, offset = 0x4, fixed_abs, tag = 'smem constant byte address 0x4 - core index']
  #allocation1 [shape = 'u32[144,128]{1,0:T(1,128)}', space=vmem, size = 0x12000, scoped, tag = 'internal scratch']
  %s0 = inlined_call_operand.vmem [shape: f32[2,8,256], index: 0, kind: input, shape index: {}]
  %s1 = inlined_call_operand.hbm [shape: f32[1,8,256], index: 1, kind: input, shape index: {}]
  %s2 = inlined_call_operand.hbm [shape: f32[1,8,256], index: 2, kind: input, shape index: {}]
  %s3 = inlined_call_operand.hbm [shape: s8[8,256,2688], index: 3, kind: input, shape index: {}]
  %s4 = inlined_call_operand.hbm [shape: f32[1,2688], index: 4, kind: input, shape index: {}]
  %s5 = inlined_call_operand.hbm [shape: f32[1,2688], index: 5, kind: input, shape index: {}]
  %s6 = inlined_call_operand.hbm [shape: f32[2,2688], index: 6, kind: output, shape index: {}]
  %s7 = sld [smem:[#allocation0]]
  $region77: #{bottleneck_in_forward.1} parent=0
    _
  %s9 = ssub.s32 1, %s7
  %s10 = scalar_select 0, %s9, %s7
  $region1: #{bottleneck_in_forward.1} parent=0
    #allocation2 [shape = 'u8[8192]{0}', space=vmem, size = 0x2000, scoped, tag = 'input window, operand 1, single buffered']
    #allocation3 [shape = 's32[2]{0}', space=sflag, size = 0x8, scoped, tag = 'scoped memory for bottleneck_in_forward.1']
    #allocation4 [shape = 's32[2]{0}', space=sflag, size = 0x8, scoped, tag = 'scoped memory for bottleneck_in_forward.1']
    #allocation5 [shape = 'u8[8192]{0}', space=vmem, size = 0x2000, scoped, tag = 'input window, operand 2, single buffered']
    #allocation6 [shape = 's32[1]{0}', space=sflag, size = 0x4, scoped, tag = 'scoped memory for bottleneck_in_forward.1']
    #allocation7 [shape = 'u8[1572864]{0}', space=vmem, size = 0x180000, scoped, tag = 'input window, operand 3']
    #allocation8 [shape = 'u8[3072]{0}', space=vmem, size = 0xc00, scoped, tag = 'input window, operand 4']
    #allocation9 [shape = 'u8[3072]{0}', space=vmem, size = 0xc00, scoped, tag = 'input window, operand 5']
    #allocation10 [shape = 'u8[6144]{0}', space=vmem, size = 0x1800, scoped, tag = 'output window, operand 0']
    %11 = vsyncpa [#allocation3], 0
    %12 = vsyncpa [#allocation6], 0
    %13 = vsyncpa [#allocation4], 0
    %s14 = scalar_lea.sflag [#allocation4], 1
    %15 = vsyncpa %s14, 0
    loop: start=0, step=1, limit=9
    $region2: #{bottleneck_in_forward.1} parent=1 // loop_pre_header
      _
    $region3: #{bottleneck_in_forward.1} parent=1 // loop_header
      %s17 = sphi 0, %s21
      %p18 = scmp.ge.s32.totalorder %s17, 9
      %s25 = sphi 0, %s25
      %s27 = sphi 0, %s25
      %s28 = sphi 0, %s27
      %s42 = sphi 0, %s28
      %s46 = sphi 0, %s46
      %s48 = sphi 0, %s46
      %s49 = sphi 0, %s48
      %s63 = sphi 0, %s49
      %s67 = sphi 0, %s67
      %s69 = sphi 0, %s67
      %s70 = sphi 0, %s69
      %s84 = sphi 0, %s70
      %s90 = sphi 0, %s92
      %s93 = sphi 0, %s90
      %s94 = sphi 0, %s93
      %s110 = sphi 0, %s94
      %s116 = sphi 0, %s118
      %s119 = sphi 0, %s116
      %s120 = sphi 0, %s119
      %s136 = sphi 0, %s120
      %s142 = sphi 0, %s144
      %s145 = sphi 0, %s142
      %s146 = sphi 0, %s145
      %s162 = sphi 0, %s146
      %s168 = sphi 0, %s170
      %s171 = sphi 0, %s168
      %s172 = sphi 0, %s171
      %s188 = sphi 0, %s172
    $region4: #{bottleneck_in_forward.1} parent=1 // loop_header_branch
      %20 = sbr.rel (%p18) target = $region8
    $region5: #{bottleneck_in_forward.1} parent=1 // loop_body
      %s22 = ssub.s32 %s17, 1
      %s23 = ssub.s32 %s17, 2
      %s24 = sadd.s32 %s17, 1
      %s26 = sadd.s32 %s25, 1
      %p29 = scmp.eq.s32.totalorder %s17, 6
      %p30 = scmp.ne.s32.totalorder %s25, %s27
      %p31 = scmp.eq.s32.totalorder %s17, 0
      %p32 = por %p30, %p31
      %p33 = scmp.ne.s32.totalorder %s25, %s27
      %p34 = scmp.eq.s32.totalorder %s22, 6
      %p35 = por %p33, %p34
      %p36 = scmp.ne.s32.totalorder %s27, %s28
      %p37 = scmp.eq.s32.totalorder %s22, 0
      %p38 = por %p36, %p37
      %p39 = scmp.ne.s32.totalorder %s27, %s28
      %p40 = scmp.eq.s32.totalorder %s23, 6
      %p41 = por %p39, %p40
      %p43 = scmp.ne.s32.totalorder %s28, %s42
      %p44 = scmp.eq.s32.totalorder %s23, 0
      %p45 = por %p43, %p44
      %s47 = sadd.s32 %s46, 1
      %p50 = scmp.eq.s32.totalorder %s17, 6
      %p51 = scmp.ne.s32.totalorder %s46, %s48
      %p52 = scmp.eq.s32.totalorder %s17, 0
      %p53 = por %p51, %p52
      %p54 = scmp.ne.s32.totalorder %s46, %s48
      %p55 = scmp.eq.s32.totalorder %s22, 6
      %p56 = por %p54, %p55
      %p57 = scmp.ne.s32.totalorder %s48, %s49
      %p58 = scmp.eq.s32.totalorder %s22, 0
      %p59 = por %p57, %p58
      %p60 = scmp.ne.s32.totalorder %s48, %s49
      %p61 = scmp.eq.s32.totalorder %s23, 6
      %p62 = por %p60, %p61
      %p64 = scmp.ne.s32.totalorder %s49, %s63
      %p65 = scmp.eq.s32.totalorder %s23, 0
      %p66 = por %p64, %p65
      %s68 = sadd.s32 %s67, 1
      %p71 = scmp.eq.s32.totalorder %s17, 6
      %p72 = scmp.ne.s32.totalorder %s67, %s69
      %p73 = scmp.eq.s32.totalorder %s17, 0
      %p74 = por %p72, %p73
      %p75 = scmp.ne.s32.totalorder %s67, %s69
      %p76 = scmp.eq.s32.totalorder %s22, 6
      %p77 = por %p75, %p76
      %p78 = scmp.ne.s32.totalorder %s69, %s70
      %p79 = scmp.eq.s32.totalorder %s22, 0
      %p80 = por %p78, %p79
      %p81 = scmp.ne.s32.totalorder %s69, %s70
      %p82 = scmp.eq.s32.totalorder %s23, 6
      %p83 = por %p81, %p82
      %p85 = scmp.ne.s32.totalorder %s70, %s84
      %p86 = scmp.eq.s32.totalorder %s23, 0
      %p87 = por %p85, %p86
      %s88 = ssub.s32 %s17, %s24
      %p89 = scmp.eq.s32.totalorder %s88, 0
      %s91 = sadd.s32 %s90, 1
      %s92 = scalar_select %p89, %s90, %s91
      %p95 = pneg %p89
      %p96 = scmp.eq.s32.totalorder %s17, 6
      %p97 = por %p95, %p96
      %p98 = scmp.ne.s32.totalorder %s90, %s93
      %p99 = scmp.eq.s32.totalorder %s17, 0
      %p100 = por %p98, %p99
      %p101 = scmp.ne.s32.totalorder %s90, %s93
      %p102 = scmp.eq.s32.totalorder %s22, 6
      %p103 = por %p101, %p102
      %p104 = scmp.ne.s32.totalorder %s93, %s94
      %p105 = scmp.eq.s32.totalorder %s22, 0
      %p106 = por %p104, %p105
      %p107 = scmp.ne.s32.totalorder %s93, %s94
      %p108 = scmp.eq.s32.totalorder %s23, 6
      %p109 = por %p107, %p108
      %p111 = scmp.ne.s32.totalorder %s94, %s110
      %p112 = scmp.eq.s32.totalorder %s23, 0
      %p113 = por %p111, %p112
      %s114 = ssub.s32 %s17, %s24
      %p115 = scmp.eq.s32.totalorder %s114, 0
      %s117 = sadd.s32 %s116, 1
      %s118 = scalar_select %p115, %s116, %s117
      %p121 = pneg %p115
      %p122 = scmp.eq.s32.totalorder %s17, 6
      %p123 = por %p121, %p122
      %p124 = scmp.ne.s32.totalorder %s116, %s119
      %p125 = scmp.eq.s32.totalorder %s17, 0
      %p126 = por %p124, %p125
      %p127 = scmp.ne.s32.totalorder %s116, %s119
      %p128 = scmp.eq.s32.totalorder %s22, 6
      %p129 = por %p127, %p128
      %p130 = scmp.ne.s32.totalorder %s119, %s120
      %p131 = scmp.eq.s32.totalorder %s22, 0
      %p132 = por %p130, %p131
      %p133 = scmp.ne.s32.totalorder %s119, %s120
      %p134 = scmp.eq.s32.totalorder %s23, 6
      %p135 = por %p133, %p134
      %p137 = scmp.ne.s32.totalorder %s120, %s136
      %p138 = scmp.eq.s32.totalorder %s23, 0
      %p139 = por %p137, %p138
      %s140 = ssub.s32 %s17, %s24
      %p141 = scmp.eq.s32.totalorder %s140, 0
      %s143 = sadd.s32 %s142, 1
      %s144 = scalar_select %p141, %s142, %s143
      %p147 = pneg %p141
      %p148 = scmp.eq.s32.totalorder %s17, 6
      %p149 = por %p147, %p148
      %p150 = scmp.ne.s32.totalorder %s142, %s145
      %p151 = scmp.eq.s32.totalorder %s17, 0
      %p152 = por %p150, %p151
      %p153 = scmp.ne.s32.totalorder %s142, %s145
      %p154 = scmp.eq.s32.totalorder %s22, 6
      %p155 = por %p153, %p154
      %p156 = scmp.ne.s32.totalorder %s145, %s146
      %p157 = scmp.eq.s32.totalorder %s22, 0
      %p158 = por %p156, %p157
      %p159 = scmp.ne.s32.totalorder %s145, %s146
      %p160 = scmp.eq.s32.totalorder %s23, 6
      %p161 = por %p159, %p160
      %p163 = scmp.ne.s32.totalorder %s146, %s162
      %p164 = scmp.eq.s32.totalorder %s23, 0
      %p165 = por %p163, %p164
      %s166 = ssub.s32 %s17, %s24
      %p167 = scmp.eq.s32.totalorder %s166, 0
      %s169 = sadd.s32 %s168, 1
      %s170 = scalar_select %p167, %s168, %s169
      %p173 = pneg %p167
      %p174 = scmp.eq.s32.totalorder %s17, 6
      %p175 = por %p173, %p174
      %p176 = scmp.ne.s32.totalorder %s168, %s171
      %p177 = scmp.eq.s32.totalorder %s17, 0
      %p178 = por %p176, %p177
      %p179 = scmp.ne.s32.totalorder %s168, %s171
      %p180 = scmp.eq.s32.totalorder %s22, 6
      %p181 = por %p179, %p180
      %p182 = scmp.ne.s32.totalorder %s171, %s172
      %p183 = scmp.eq.s32.totalorder %s22, 0
      %p184 = por %p182, %p183
      %p185 = scmp.ne.s32.totalorder %s171, %s172
      %p186 = scmp.eq.s32.totalorder %s23, 6
      %p187 = por %p185, %p186
      %p189 = scmp.ne.s32.totalorder %s172, %s188
      %p190 = scmp.eq.s32.totalorder %s23, 0
      %p191 = por %p189, %p190
      %p192 = scmp.le.s32.totalorder 1, %s17
      %p193 = scmp.lt.s32.totalorder %s17, 8
      %p194 = pnand %p192, %p193
      %p195 = pneg %p194
      // Predicated region
      $region9: #{bottleneck_in_forward.1} parent=5 // pred_check
        _
      $region10: #{bottleneck_in_forward.1} parent=5 // pred_check_branch
        %197 = sbr.rel (%p194) target = $region12
      $region11: #{bottleneck_in_forward.1} parent=5 // pred_region
        %s198 = ssub.s32 %s17, 1
        // Predicated region
        $region13: #{bottleneck_in_forward.1} parent=11 // pred_check
          %p199 = pneg %p38
        $region14: #{bottleneck_in_forward.1} parent=11 // pred_check_branch
          %201 = sbr.rel (%p199) target = $region16
        $region15: #{bottleneck_in_forward.1} parent=11 // pred_region
          _
        $region16: #{bottleneck_in_forward.1} parent=11 // pred_fallthru
          _
        // Predicated region
        $region17: #{bottleneck_in_forward.1} parent=11 // pred_check
          %p202 = pneg %p59
        $region18: #{bottleneck_in_forward.1} parent=11 // pred_check_branch
          %204 = sbr.rel (%p202) target = $region20
        $region19: #{bottleneck_in_forward.1} parent=11 // pred_region
          %s206 = ssub.s32 256, 256
          %207 = vsyncadd [#allocation3], %s206
          %s209 = sshll.u32 [#allocation2], 4
          %s210 = int_to_ptr.vmem [resolvable:$true] %s209
          %212 = dma.hbm_to_vmem [thread:$0]  %s1, 256, %s210, [#allocation3]
        $region20: #{bottleneck_in_forward.1} parent=11 // pred_fallthru
          _
        // Predicated region
        $region21: #{bottleneck_in_forward.1} parent=11 // pred_check
          %p213 = pneg %p80
        $region22: #{bottleneck_in_forward.1} parent=11 // pred_check_branch
          %215 = sbr.rel (%p213) target = $region24
        $region23: #{bottleneck_in_forward.1} parent=11 // pred_region
          %s217 = ssub.s32 256, 256
          %218 = vsyncadd [#allocation6], %s217
          %s220 = sshll.u32 [#allocation5], 4
          %s221 = int_to_ptr.vmem [resolvable:$true] %s220
          %223 = dma.hbm_to_vmem [thread:$0]  %s2, 256, %s221, [#allocation6]
        $region24: #{bottleneck_in_forward.1} parent=11 // pred_fallthru
          _
      $region12: #{bottleneck_in_forward.1} parent=5 // pred_fallthru
        _
      %p224 = scmp.lt.s32.totalorder %s17, 7
      // Predicated region
      $region25: #{bottleneck_in_forward.1} parent=5 // pred_check
        %p225 = pneg %p224
      $region26: #{bottleneck_in_forward.1} parent=5 // pred_check_branch
        %227 = sbr.rel (%p225) target = $region28
      $region27: #{bottleneck_in_forward.1} parent=5 // pred_region
        // Predicated region
        $region29: #{bottleneck_in_forward.1} parent=27 // pred_check
          %p228 = pneg %p100
        $region30: #{bottleneck_in_forward.1} parent=27 // pred_check_branch
          %230 = sbr.rel (%p228) target = $region32
        $region31: #{bottleneck_in_forward.1} parent=27 // pred_region
          %s231 = sand.u32 %s17, 1
          %s232 = scalar_lea.sflag [#allocation3], %s231
          %s233 = sand.u32 %s90, 1
          %s234 = smul.addr %s233, 1536
          %s235 = scalar_lea.vmem [#allocation7], %s234
          %s236 = smul.u32 3, %s17
          %s238 = ssub.s32 24576, 24576
          %239 = vsyncadd %s232, %s238
          %s240 = smul.addr %s236, 128
          %s241 = scalar_lea.hbm %s3, %s240
          %s242 = sshll.u32 %s235, 4
          %s243 = int_to_ptr.vmem [resolvable:$true] %s242
          %248 = dma.hbm_to_vmem [thread:$0]  %s241, 24576, %s243, %s232, 2688, 384, 24
        $region32: #{bottleneck_in_forward.1} parent=27 // pred_fallthru
          _
        // Predicated region
        $region33: #{bottleneck_in_forward.1} parent=27 // pred_check
          %p249 = pneg %p126
        $region34: #{bottleneck_in_forward.1} parent=27 // pred_check_branch
          %251 = sbr.rel (%p249) target = $region36
        $region35: #{bottleneck_in_forward.1} parent=27 // pred_region
          %s252 = sand.u32 %s17, 1
          %s253 = scalar_lea.sflag [#allocation3], %s252
          %s254 = sand.u32 %s116, 1
          %s255 = smul.addr %s254, 3
          %s256 = scalar_lea.vmem [#allocation8], %s255
          %s257 = smul.u32 3, %s17
          %s259 = ssub.s32 48, 48
          %260 = vsyncadd %s253, %s259
          %s261 = smul.addr %s257, 16
          %s262 = scalar_lea.hbm %s4, %s261
          %s264 = sshll.u32 %s256, 4
          %s265 = int_to_ptr.vmem [resolvable:$true] %s264
          %267 = dma.hbm_to_vmem [thread:$0]  %s262, 48, %s265, %s253
        $region36: #{bottleneck_in_forward.1} parent=27 // pred_fallthru
          _
        // Predicated region
        $region37: #{bottleneck_in_forward.1} parent=27 // pred_check
          %p268 = pneg %p152
        $region38: #{bottleneck_in_forward.1} parent=27 // pred_check_branch
          %270 = sbr.rel (%p268) target = $region40
        $region39: #{bottleneck_in_forward.1} parent=27 // pred_region
          %s271 = sand.u32 %s17, 1
          %s272 = scalar_lea.sflag [#allocation3], %s271
          %s273 = sand.u32 %s142, 1
          %s274 = smul.addr %s273, 3
          %s275 = scalar_lea.vmem [#allocation9], %s274
          %s276 = smul.u32 3, %s17
          %s278 = ssub.s32 48, 48
          %279 = vsyncadd %s272, %s278
          %s280 = smul.addr %s276, 16
          %s281 = scalar_lea.hbm %s5, %s280
          %s283 = sshll.u32 %s275, 4
          %s284 = int_to_ptr.vmem [resolvable:$true] %s283
          %286 = dma.hbm_to_vmem [thread:$0]  %s281, 48, %s284, %s272
        $region40: #{bottleneck_in_forward.1} parent=27 // pred_fallthru
          _
      $region28: #{bottleneck_in_forward.1} parent=5 // pred_fallthru
        _
      %p287 = scmp.le.s32.totalorder 1, %s17
      %p288 = scmp.lt.s32.totalorder %s17, 8
      %p289 = pnand %p287, %p288
      %p290 = pneg %p289
      // Predicated region
      $region41: #{bottleneck_in_forward.1} parent=5 // pred_check
        _
      $region42: #{bottleneck_in_forward.1} parent=5 // pred_check_branch
        %292 = sbr.rel (%p289) target = $region44
      $region43: #{bottleneck_in_forward.1} parent=5 // pred_region
        %s293 = ssub.s32 %s17, 1
        // Predicated region
        $region45: #{bottleneck_in_forward.1} parent=43 // pred_check
          %p294 = pneg %p59
        $region46: #{bottleneck_in_forward.1} parent=43 // pred_check_branch
          %296 = sbr.rel (%p294) target = $region48
        $region47: #{bottleneck_in_forward.1} parent=43 // pred_region
          %297 = dma.done [#allocation3], 256
        $region48: #{bottleneck_in_forward.1} parent=43 // pred_fallthru
          _
        // Predicated region
        $region49: #{bottleneck_in_forward.1} parent=43 // pred_check
          %p298 = pneg %p80
        $region50: #{bottleneck_in_forward.1} parent=43 // pred_check_branch
          %300 = sbr.rel (%p298) target = $region52
        $region51: #{bottleneck_in_forward.1} parent=43 // pred_region
          %301 = dma.done [#allocation6], 256
        $region52: #{bottleneck_in_forward.1} parent=43 // pred_fallthru
          _
        %s302 = sand.u32 %s22, 1
        %s303 = scalar_lea.sflag [#allocation3], %s302
        %s304 = sand.u32 %s93, 1
        %s305 = smul.addr %s304, 1536
        %s306 = scalar_lea.vmem [#allocation7], %s305
        // Predicated region
        $region53: #{bottleneck_in_forward.1} parent=43 // pred_check
          %p307 = pneg %p106
        $region54: #{bottleneck_in_forward.1} parent=43 // pred_check_branch
          %309 = sbr.rel (%p307) target = $region56
        $region55: #{bottleneck_in_forward.1} parent=43 // pred_region
          %310 = dma.done %s303, 24576
        $region56: #{bottleneck_in_forward.1} parent=43 // pred_fallthru
          _
        %s311 = sand.u32 %s22, 1
        %s312 = scalar_lea.sflag [#allocation3], %s311
        %s313 = sand.u32 %s119, 1
        %s314 = smul.addr %s313, 3
        %s315 = scalar_lea.vmem [#allocation8], %s314
        // Predicated region
        $region57: #{bottleneck_in_forward.1} parent=43 // pred_check
          %p316 = pneg %p132
        $region58: #{bottleneck_in_forward.1} parent=43 // pred_check_branch
          %318 = sbr.rel (%p316) target = $region60
        $region59: #{bottleneck_in_forward.1} parent=43 // pred_region
          %319 = dma.done %s312, 48
        $region60: #{bottleneck_in_forward.1} parent=43 // pred_fallthru
          _
        %s320 = sand.u32 %s22, 1
        %s321 = scalar_lea.sflag [#allocation3], %s320
        %s322 = sand.u32 %s145, 1
        %s323 = smul.addr %s322, 3
        %s324 = scalar_lea.vmem [#allocation9], %s323
        // Predicated region
        $region61: #{bottleneck_in_forward.1} parent=43 // pred_check
          %p325 = pneg %p158
        $region62: #{bottleneck_in_forward.1} parent=43 // pred_check_branch
          %327 = sbr.rel (%p325) target = $region64
        $region63: #{bottleneck_in_forward.1} parent=43 // pred_region
          %328 = dma.done %s321, 48
        $region64: #{bottleneck_in_forward.1} parent=43 // pred_fallthru
          _
        %p329 = pneg %p38
        %p330 = pneg %p35
        %p331 = pneg %p59
        %p332 = pneg %p56
        %p333 = pneg %p80
        %p334 = pneg %p77
        %s335 = sand.u32 %s22, 1
        %s336 = scalar_lea.sflag [#allocation3], %s335
        %s337 = sand.u32 %s93, 1
        %s338 = smul.addr %s337, 1536
        %s339 = scalar_lea.vmem [#allocation7], %s338
        %p340 = pneg %p106
        %p341 = pneg %p103
        %s342 = sand.u32 %s22, 1
        %s343 = scalar_lea.sflag [#allocation3], %s342
        %s344 = sand.u32 %s119, 1
        %s345 = smul.addr %s344, 3
        %s346 = scalar_lea.vmem [#allocation8], %s345
        %p347 = pneg %p132
        %p348 = pneg %p129
        %s349 = sand.u32 %s22, 1
        %s350 = scalar_lea.sflag [#allocation3], %s349
        %s351 = sand.u32 %s145, 1
        %s352 = smul.addr %s351, 3
        %s353 = scalar_lea.vmem [#allocation9], %s352
        %p354 = pneg %p158
        %p355 = pneg %p155
        %p356 = pneg %p184
        %p357 = pneg %p181
        %s358 = sand.u32 %s171, 1
        %s359 = scalar_lea.sflag [#allocation4], %s358
        %s360 = sand.u32 %s171, 1
        %s361 = smul.addr %s360, 6
        %s362 = scalar_lea.vmem [#allocation10], %s361
        %s363 = smul.u32 3, %s22
        %s364 = smul.u32 3, %s22
        %s365 = smul.u32 3, %s22
        %s366 = smul.u32 3, %s22
        %v368 = vld [vmem:[%s0] sm:$0xff]
        %v369 = vld [vmem:[%s0 + $0x8] sm:$0xff]
        %v370 = vld [vmem:[%s0 + $0x10] sm:$0xff]
        %v371 = vld [vmem:[%s0 + $0x18] sm:$0xff]
        %v372 = vadd.f32 %v368, %v369
        %373 = vadd.xlane.f32.xlu0 %v372
        %v374 = vpop.xlane.xlu0 %373
        %v375 = vadd.f32 %v370, %v371
        %376 = vadd.xlane.f32.xlu0 %v375
        %v377 = vpop.xlane.xlu0 %376
        %v378 = vrcp.pop 256.0
        %v379 = vmul.f32 %v374, %v378
        %v380 = vmul.f32 %v377, %v378
        %v381 = vsub.f32 %v368, %v379
        %v382 = vsub.f32 %v369, %v379
        %v383 = vsub.f32 %v370, %v380
        %v384 = vsub.f32 %v371, %v380
        %v385 = vmul.f32 %v381, %v381
        %v386 = vmul.f32 %v382, %v382
        %v387 = vmul.f32 %v383, %v383
        %v388 = vmul.f32 %v384, %v384
        %v389 = vadd.f32 %v385, %v386
        %390 = vadd.xlane.f32.xlu0 %v389
        %v391 = vpop.xlane.xlu0 %390
        %v392 = vadd.f32 %v387, %v388
        %393 = vadd.xlane.f32.xlu0 %v392
        %v394 = vpop.xlane.xlu0 %393
        %v395 = vmul.f32 %v391, %v378
        %v396 = vmul.f32 %v394, %v378
        %v397 = vadd.f32 %v395, 1e-05
        %v398 = vadd.f32 %v396, 1e-05
        %v399 = vrsqrt.pop %v397
        %v400 = vrsqrt.pop %v398
        %v401 = vmul.f32 %v381, %v399
        %v402 = vmul.f32 %v382, %v399
        %v403 = vmul.f32 %v383, %v400
        %v404 = vmul.f32 %v384, %v400
        %v405 = vld [vmem:[#allocation2] sm:$0xff]
        %v406 = vld [vmem:[#allocation2 + $0x8] sm:$0xff]
        %v407 = vmul.f32 %v401, %v405
        %v408 = vmul.f32 %v402, %v406
        %v409 = vmul.f32 %v403, %v405
        %v410 = vmul.f32 %v404, %v406
        %v411 = vld [vmem:[#allocation5] sm:$0xff]
        %v412 = vld [vmem:[#allocation5 + $0x8] sm:$0xff]
        %v413 = vadd.f32 %v407, %v411
        %v414 = vadd.f32 %v408, %v412
        %v415 = vadd.f32 %v409, %v411
        %v416 = vadd.f32 %v410, %v412
        %vm417 = vcmp.ge.f32.partialorder %v413, 0.0
        %vm418 = vcmp.ge.f32.partialorder %v414, 0.0
        %vm419 = vcmp.ge.f32.partialorder %v415, 0.0
        %vm420 = vcmp.ge.f32.partialorder %v416, 0.0
        %v421 = vmul.f32 %v413, 0.01
        %v422 = vmul.f32 %v414, 0.01
        %v423 = vmul.f32 %v415, 0.01
        %v424 = vmul.f32 %v416, 0.01
        %v425 = vsel %vm417, %v413, %v421
        %v426 = vsel %vm418, %v414, %v422
        %v427 = vsel %vm419, %v415, %v423
        %v428 = vsel %vm420, %v416, %v424
        %v429 = vpack.c.bf16 %v425, %v425
        %v430 = vpack.c.bf16 %v426, %v426
        %v431 = vpack.c.bf16 %v427, %v427
        %v432 = vpack.c.bf16 %v428, %v428
        %v433 = vld [vmem:[%s306] sm:$0xff]
        %v434 = vld [vmem:[%s306 + $0x8] sm:$0xff]
        %v435 = vld [vmem:[%s306 + $0x10] sm:$0xff]
        %v436 = vld [vmem:[%s306 + $0x18] sm:$0xff]
        %v437 = vld [vmem:[%s306 + $0x20] sm:$0xff]
        %v438 = vld [vmem:[%s306 + $0x28] sm:$0xff]
        %v439 = vld [vmem:[%s306 + $0x30] sm:$0xff]
        %v440 = vld [vmem:[%s306 + $0x38] sm:$0xff]
        %v441 = vld [vmem:[%s306 + $0x40] sm:$0xff]
        %v442 = vld [vmem:[%s306 + $0x48] sm:$0xff]
        %v443 = vld [vmem:[%s306 + $0x50] sm:$0xff]
        %v444 = vld [vmem:[%s306 + $0x58] sm:$0xff]
        %v445 = vld [vmem:[%s306 + $0x60] sm:$0xff]
        %v446 = vld [vmem:[%s306 + $0x68] sm:$0xff]
        %v447 = vld [vmem:[%s306 + $0x70] sm:$0xff]
        %v448 = vld [vmem:[%s306 + $0x78] sm:$0xff]
        %v449 = vld [vmem:[%s306 + $0x80] sm:$0xff]
        %v450 = vld [vmem:[%s306 + $0x88] sm:$0xff]
        %v451 = vld [vmem:[%s306 + $0x90] sm:$0xff]
        %v452 = vld [vmem:[%s306 + $0x98] sm:$0xff]
        %v453 = vld [vmem:[%s306 + $0xa0] sm:$0xff]
        %v454 = vld [vmem:[%s306 + $0xa8] sm:$0xff]
        %v455 = vld [vmem:[%s306 + $0xb0] sm:$0xff]
        %v456 = vld [vmem:[%s306 + $0xb8] sm:$0xff]
        %v457 = vunpack.c.l.s8.bf16 %v433
        %v458 = vunpack.c.l.s8.bf16 %v434
        %v459 = vunpack.c.l.s8.bf16 %v435
        %v460 = vunpack.c.h.s8.bf16 %v433
        %v461 = vunpack.c.h.s8.bf16 %v434
        %v462 = vunpack.c.h.s8.bf16 %v435
        %v463 = vunpack.c.l.s8.bf16 %v436
        %v464 = vunpack.c.l.s8.bf16 %v437
        %v465 = vunpack.c.l.s8.bf16 %v438
        %v466 = vunpack.c.h.s8.bf16 %v436
        %v467 = vunpack.c.h.s8.bf16 %v437
        %v468 = vunpack.c.h.s8.bf16 %v438
        %v469 = vunpack.c.l.s8.bf16 %v439
        %v470 = vunpack.c.l.s8.bf16 %v440
        %v471 = vunpack.c.l.s8.bf16 %v441
        %v472 = vunpack.c.h.s8.bf16 %v439
        %v473 = vunpack.c.h.s8.bf16 %v440
        %v474 = vunpack.c.h.s8.bf16 %v441
        %v475 = vunpack.c.l.s8.bf16 %v442
        %v476 = vunpack.c.l.s8.bf16 %v443
        %v477 = vunpack.c.l.s8.bf16 %v444
        %v478 = vunpack.c.h.s8.bf16 %v442
        %v479 = vunpack.c.h.s8.bf16 %v443
        %v480 = vunpack.c.h.s8.bf16 %v444
        %v481 = vunpack.c.l.s8.bf16 %v445
        %v482 = vunpack.c.l.s8.bf16 %v446
        %v483 = vunpack.c.l.s8.bf16 %v447
        %v484 = vunpack.c.h.s8.bf16 %v445
        %v485 = vunpack.c.h.s8.bf16 %v446
        %v486 = vunpack.c.h.s8.bf16 %v447
        %v487 = vunpack.c.l.s8.bf16 %v448
        %v488 = vunpack.c.l.s8.bf16 %v449
        %v489 = vunpack.c.l.s8.bf16 %v450
        %v490 = vunpack.c.h.s8.bf16 %v448
        %v491 = vunpack.c.h.s8.bf16 %v449
        %v492 = vunpack.c.h.s8.bf16 %v450
        %v493 = vunpack.c.l.s8.bf16 %v451
        %v494 = vunpack.c.l.s8.bf16 %v452
        %v495 = vunpack.c.l.s8.bf16 %v453
        %v496 = vunpack.c.h.s8.bf16 %v451
        %v497 = vunpack.c.h.s8.bf16 %v452
        %v498 = vunpack.c.h.s8.bf16 %v453
        %v499 = vunpack.c.l.s8.bf16 %v454
        %v500 = vunpack.c.l.s8.bf16 %v455
        %v501 = vunpack.c.l.s8.bf16 %v456
        %v502 = vunpack.c.h.s8.bf16 %v454
        %v503 = vunpack.c.h.s8.bf16 %v455
        %v504 = vunpack.c.h.s8.bf16 %v456
        %s505 = scalar_lea.vmem %s306, 192 [#allocation7]
        %v506 = vld [vmem:[%s505] sm:$0xff]
        %v507 = vld [vmem:[%s505 + $0x8] sm:$0xff]
        %v508 = vld [vmem:[%s505 + $0x10] sm:$0xff]
        %v509 = vld [vmem:[%s505 + $0x18] sm:$0xff]
        %v510 = vld [vmem:[%s505 + $0x20] sm:$0xff]
        %v511 = vld [vmem:[%s505 + $0x28] sm:$0xff]
        %v512 = vld [vmem:[%s505 + $0x30] sm:$0xff]
        %v513 = vld [vmem:[%s505 + $0x38] sm:$0xff]
        %v514 = vld [vmem:[%s505 + $0x40] sm:$0xff]
        %v515 = vld [vmem:[%s505 + $0x48] sm:$0xff]
        %v516 = vld [vmem:[%s505 + $0x50] sm:$0xff]
        %v517 = vld [vmem:[%s505 + $0x58] sm:$0xff]
        %v518 = vld [vmem:[%s505 + $0x60] sm:$0xff]
        %v519 = vld [vmem:[%s505 + $0x68] sm:$0xff]
        %v520 = vld [vmem:[%s505 + $0x70] sm:$0xff]
        %v521 = vld [vmem:[%s505 + $0x78] sm:$0xff]
        %v522 = vld [vmem:[%s505 + $0x80] sm:$0xff]
        %v523 = vld [vmem:[%s505 + $0x88] sm:$0xff]
        %v524 = vld [vmem:[%s505 + $0x90] sm:$0xff]
        %v525 = vld [vmem:[%s505 + $0x98] sm:$0xff]
        %v526 = vld [vmem:[%s505 + $0xa0] sm:$0xff]
        %v527 = vld [vmem:[%s505 + $0xa8] sm:$0xff]
        %v528 = vld [vmem:[%s505 + $0xb0] sm:$0xff]
        %v529 = vld [vmem:[%s505 + $0xb8] sm:$0xff]
        %v530 = vunpack.c.l.s8.bf16 %v506
        %v531 = vunpack.c.l.s8.bf16 %v507
        %v532 = vunpack.c.l.s8.bf16 %v508
        %v533 = vunpack.c.h.s8.bf16 %v506
        %v534 = vunpack.c.h.s8.bf16 %v507
        %v535 = vunpack.c.h.s8.bf16 %v508
        %v536 = vunpack.c.l.s8.bf16 %v509
        %v537 = vunpack.c.l.s8.bf16 %v510
        %v538 = vunpack.c.l.s8.bf16 %v511
        %v539 = vunpack.c.h.s8.bf16 %v509
        %v540 = vunpack.c.h.s8.bf16 %v510
        %v541 = vunpack.c.h.s8.bf16 %v511
        %v542 = vunpack.c.l.s8.bf16 %v512
        %v543 = vunpack.c.l.s8.bf16 %v513
        %v544 = vunpack.c.l.s8.bf16 %v514
        %v545 = vunpack.c.h.s8.bf16 %v512
        %v546 = vunpack.c.h.s8.bf16 %v513
        %v547 = vunpack.c.h.s8.bf16 %v514
        %v548 = vunpack.c.l.s8.bf16 %v515
        %v549 = vunpack.c.l.s8.bf16 %v516
        %v550 = vunpack.c.l.s8.bf16 %v517
        %v551 = vunpack.c.h.s8.bf16 %v515
        %v552 = vunpack.c.h.s8.bf16 %v516
        %v553 = vunpack.c.h.s8.bf16 %v517
        %v554 = vunpack.c.l.s8.bf16 %v518
        %v555 = vunpack.c.l.s8.bf16 %v519
        %v556 = vunpack.c.l.s8.bf16 %v520
        %v557 = vunpack.c.h.s8.bf16 %v518
        %v558 = vunpack.c.h.s8.bf16 %v519
        %v559 = vunpack.c.h.s8.bf16 %v520
        %v560 = vunpack.c.l.s8.bf16 %v521
        %v561 = vunpack.c.l.s8.bf16 %v522
        %v562 = vunpack.c.l.s8.bf16 %v523
        %v563 = vunpack.c.h.s8.bf16 %v521
        %v564 = vunpack.c.h.s8.bf16 %v522
        %v565 = vunpack.c.h.s8.bf16 %v523
        %v566 = vunpack.c.l.s8.bf16 %v524
        %v567 = vunpack.c.l.s8.bf16 %v525
        %v568 = vunpack.c.l.s8.bf16 %v526
        %v569 = vunpack.c.h.s8.bf16 %v524
        %v570 = vunpack.c.h.s8.bf16 %v525
        %v571 = vunpack.c.h.s8.bf16 %v526
        %v572 = vunpack.c.l.s8.bf16 %v527
        %v573 = vunpack.c.l.s8.bf16 %v528
        %v574 = vunpack.c.l.s8.bf16 %v529
        %v575 = vunpack.c.h.s8.bf16 %v527
        %v576 = vunpack.c.h.s8.bf16 %v528
        %v577 = vunpack.c.h.s8.bf16 %v529
        %v582 = vunpack.c.l.b16 %v429
        %v583 = vunpack.c.l.b16 %v430
        %v584 = vunpack.c.l.b16 %v431
        %v585 = vunpack.c.l.b16 %v432
        %v586 = vrot.slane %v582, 1
        %vm587 = vcmask 1041409
        %v588 = vsel %vm587, %v584, %v586
        %v589 = vrot.slane %v583, 1
        %v590 = vsel %vm587, %v585, %v589
        %v591 = vpack.c.b16 %v588, %v588
        %v592 = vpack.c.b16 %v590, %v590
        %595 = vmatprep.subr.bf16.mxu0 %v552
        %596 = vmatpush1.bf16.msra.mxu0 %v551
        %597 = vmatprep.subr.bf16.mxu0 %v549
        %598 = vmatpush1.bf16.msra.mxu0 %v548
        %599 = vmatprep.subr.bf16.mxu0 %v546
        %600 = vmatpush1.bf16.msra.mxu0 %v545
        %601 = vmatprep.subr.bf16.mxu0 %v543
        %602 = vmatpush1.bf16.msra.mxu0 %v542
        %603 = vmatprep.subr.bf16.mxu0 %v540
        %604 = vmatpush1.bf16.msra.mxu0 %v539
        %605 = vmatprep.subr.bf16.mxu0 %v537
        %606 = vmatpush1.bf16.msra.mxu0 %v536
        %607 = vmatprep.subr.bf16.mxu0 %v534
        %608 = vmatpush1.bf16.msra.mxu0 %v533
        %609 = vmatprep.subr.bf16.mxu0 %v531
        %610 = vmatpush1.bf16.msra.mxu0 %v530
        %611 = vmatprep.subr.bf16.mxu0 %v576
        %612 = vmatpush2.bf16.msra.mxu0 %v575
        %613 = vmatprep.subr.bf16.mxu0 %v573
        %614 = vmatpush2.bf16.msra.mxu0 %v572
        %615 = vmatprep.subr.bf16.mxu0 %v570
        %616 = vmatpush2.bf16.msra.mxu0 %v569
        %617 = vmatprep.subr.bf16.mxu0 %v567
        %618 = vmatpush2.bf16.msra.mxu0 %v566
        %619 = vmatprep.subr.bf16.mxu0 %v564
        %620 = vmatpush2.bf16.msra.mxu0 %v563
        %621 = vmatprep.subr.bf16.mxu0 %v561
        %622 = vmatpush2.bf16.msra.mxu0 %v560
        %623 = vmatprep.subr.bf16.mxu0 %v558
        %624 = vmatpush2.bf16.msra.mxu0 %v557
        %625 = vmatprep.subr.bf16.mxu0 %v555
        %626 = vmatpush2.bf16.msra.mxu0 %v554
        %627 = vmatprep.mubr.bf16.mxu0 %v592
        %628 = vmatmul.mubr.bf16.gmra.mxu0 %v591
        %v629 = vpop.f32.mrf.mxu0
        %v630 = vadd.f32 0.0, %v629
        %v631 = vpop.f32.mrf.mxu0
        %v632 = vadd.f32 0.0, %v631
        %v633 = vpop.f32.mrf.mxu0
        %v634 = vpop.f32.mrf.mxu0
        %635 = vdwg.mxu0
        %636 = vmatprep.subr.bf16.mxu0 0
        %637 = vmatpush1.bf16.msra.mxu0 %v553
        %638 = vmatprep.subr.bf16.mxu0 0
        %639 = vmatpush1.bf16.msra.mxu0 %v550
        %640 = vmatprep.subr.bf16.mxu0 0
        %641 = vmatpush1.bf16.msra.mxu0 %v547
        %642 = vmatprep.subr.bf16.mxu0 0
        %643 = vmatpush1.bf16.msra.mxu0 %v544
        %644 = vmatprep.subr.bf16.mxu0 0
        %645 = vmatpush1.bf16.msra.mxu0 %v541
        %646 = vmatprep.subr.bf16.mxu0 0
        %647 = vmatpush1.bf16.msra.mxu0 %v538
        %648 = vmatprep.subr.bf16.mxu0 0
        %649 = vmatpush1.bf16.msra.mxu0 %v535
        %650 = vmatprep.subr.bf16.mxu0 0
        %651 = vmatpush1.bf16.msra.mxu0 %v532
        %652 = vmatprep.subr.bf16.mxu0 0
        %653 = vmatpush2.bf16.msra.mxu0 %v577
        %654 = vmatprep.subr.bf16.mxu0 0
        %655 = vmatpush2.bf16.msra.mxu0 %v574
        %656 = vmatprep.subr.bf16.mxu0 0
        %657 = vmatpush2.bf16.msra.mxu0 %v571
        %658 = vmatprep.subr.bf16.mxu0 0
        %659 = vmatpush2.bf16.msra.mxu0 %v568
        %660 = vmatprep.subr.bf16.mxu0 0
        %661 = vmatpush2.bf16.msra.mxu0 %v565
        %662 = vmatprep.subr.bf16.mxu0 0
        %663 = vmatpush2.bf16.msra.mxu0 %v562
        %664 = vmatprep.subr.bf16.mxu0 0
        %665 = vmatpush2.bf16.msra.mxu0 %v559
        %666 = vmatprep.subr.bf16.mxu0 0
        %667 = vmatpush2.bf16.msra.mxu0 %v556
        %668 = vmatprep.mubr.bf16.mxu0 %v592
        %669 = vmatmul.mubr.bf16.gmra.mxu0 %v591
        %v670 = vpop.f32.mrf.mxu0
        %v671 = vadd.f32 0.0, %v670
        %v672 = vpop.f32.mrf.mxu0
        %v673 = vpop.f32.mrf.mxu0
        %v674 = vpop.f32.mrf.mxu0
        %675 = vdwg.mxu0
        %v676 = vrot.slane %v584, 7
        %v677 = vsel %vm587, %v676, %v582
        %v678 = vrot.slane %v585, 7
        %v679 = vsel %vm587, %v678, %v583
        %v680 = vpack.c.b16 %v677, %v677
        %v681 = vpack.c.b16 %v679, %v679
        %684 = vmatprep.subr.bf16.mxu0 %v479
        %685 = vmatpush1.bf16.msra.mxu0 %v478
        %686 = vmatprep.subr.bf16.mxu0 %v476
        %687 = vmatpush1.bf16.msra.mxu0 %v475
        %688 = vmatprep.subr.bf16.mxu0 %v473
        %689 = vmatpush1.bf16.msra.mxu0 %v472
        %690 = vmatprep.subr.bf16.mxu0 %v470
        %691 = vmatpush1.bf16.msra.mxu0 %v469
        %692 = vmatprep.subr.bf16.mxu0 %v467
        %693 = vmatpush1.bf16.msra.mxu0 %v466
        %694 = vmatprep.subr.bf16.mxu0 %v464
        %695 = vmatpush1.bf16.msra.mxu0 %v463
        %696 = vmatprep.subr.bf16.mxu0 %v461
        %697 = vmatpush1.bf16.msra.mxu0 %v460
        %698 = vmatprep.subr.bf16.mxu0 %v458
        %699 = vmatpush1.bf16.msra.mxu0 %v457
        %700 = vmatprep.subr.bf16.mxu0 %v503
        %701 = vmatpush2.bf16.msra.mxu0 %v502
        %702 = vmatprep.subr.bf16.mxu0 %v500
        %703 = vmatpush2.bf16.msra.mxu0 %v499
        %704 = vmatprep.subr.bf16.mxu0 %v497
        %705 = vmatpush2.bf16.msra.mxu0 %v496
        %706 = vmatprep.subr.bf16.mxu0 %v494
        %707 = vmatpush2.bf16.msra.mxu0 %v493
        %708 = vmatprep.subr.bf16.mxu0 %v491
        %709 = vmatpush2.bf16.msra.mxu0 %v490
        %710 = vmatprep.subr.bf16.mxu0 %v488
        %711 = vmatpush2.bf16.msra.mxu0 %v487
        %712 = vmatprep.subr.bf16.mxu0 %v485
        %713 = vmatpush2.bf16.msra.mxu0 %v484
        %714 = vmatprep.subr.bf16.mxu0 %v482
        %715 = vmatpush2.bf16.msra.mxu0 %v481
        %716 = vmatprep.mubr.bf16.mxu0 %v681
        %717 = vmatmul.mubr.bf16.gmra.mxu0 %v680
        %v718 = vpop.f32.mrf.mxu0
        %v719 = vadd.f32 %v630, %v718
        %v720 = vpop.f32.mrf.mxu0
        %v721 = vadd.f32 %v632, %v720
        %v722 = vpop.f32.mrf.mxu0
        %v723 = vpop.f32.mrf.mxu0
        %724 = vdwg.mxu0
        %725 = vmatprep.subr.bf16.mxu0 0
        %726 = vmatpush1.bf16.msra.mxu0 %v480
        %727 = vmatprep.subr.bf16.mxu0 0
        %728 = vmatpush1.bf16.msra.mxu0 %v477
        %729 = vmatprep.subr.bf16.mxu0 0
        %730 = vmatpush1.bf16.msra.mxu0 %v474
        %731 = vmatprep.subr.bf16.mxu0 0
        %732 = vmatpush1.bf16.msra.mxu0 %v471
        %733 = vmatprep.subr.bf16.mxu0 0
        %734 = vmatpush1.bf16.msra.mxu0 %v468
        %735 = vmatprep.subr.bf16.mxu0 0
        %736 = vmatpush1.bf16.msra.mxu0 %v465
        %737 = vmatprep.subr.bf16.mxu0 0
        %738 = vmatpush1.bf16.msra.mxu0 %v462
        %739 = vmatprep.subr.bf16.mxu0 0
        %740 = vmatpush1.bf16.msra.mxu0 %v459
        %741 = vmatprep.subr.bf16.mxu0 0
        %742 = vmatpush2.bf16.msra.mxu0 %v504
        %743 = vmatprep.subr.bf16.mxu0 0
        %744 = vmatpush2.bf16.msra.mxu0 %v501
        %745 = vmatprep.subr.bf16.mxu0 0
        %746 = vmatpush2.bf16.msra.mxu0 %v498
        %747 = vmatprep.subr.bf16.mxu0 0
        %748 = vmatpush2.bf16.msra.mxu0 %v495
        %749 = vmatprep.subr.bf16.mxu0 0
        %750 = vmatpush2.bf16.msra.mxu0 %v492
        %751 = vmatprep.subr.bf16.mxu0 0
        %752 = vmatpush2.bf16.msra.mxu0 %v489
        %753 = vmatprep.subr.bf16.mxu0 0
        %754 = vmatpush2.bf16.msra.mxu0 %v486
        %755 = vmatprep.subr.bf16.mxu0 0
        %756 = vmatpush2.bf16.msra.mxu0 %v483
        %757 = vmatprep.mubr.bf16.mxu0 %v681
        %758 = vmatmul.mubr.bf16.gmra.mxu0 %v680
        %v759 = vpop.f32.mrf.mxu0
        %v760 = vadd.f32 %v671, %v759
        %v761 = vpop.f32.mrf.mxu0
        %v762 = vpop.f32.mrf.mxu0
        %v763 = vpop.f32.mrf.mxu0
        %764 = vdwg.mxu0
        %s765 = scalar_lea.vmem %s306, 384 [#allocation7]
        %v766 = vld [vmem:[%s765] sm:$0xff]
        %v767 = vld [vmem:[%s765 + $0x8] sm:$0xff]
        %v768 = vld [vmem:[%s765 + $0x10] sm:$0xff]
        %v769 = vld [vmem:[%s765 + $0x18] sm:$0xff]
        %v770 = vld [vmem:[%s765 + $0x20] sm:$0xff]
        %v771 = vld [vmem:[%s765 + $0x28] sm:$0xff]
        %v772 = vld [vmem:[%s765 + $0x30] sm:$0xff]
        %v773 = vld [vmem:[%s765 + $0x38] sm:$0xff]
        %v774 = vld [vmem:[%s765 + $0x40] sm:$0xff]
        %v775 = vld [vmem:[%s765 + $0x48] sm:$0xff]
        %v776 = vld [vmem:[%s765 + $0x50] sm:$0xff]
        %v777 = vld [vmem:[%s765 + $0x58] sm:$0xff]
        %v778 = vld [vmem:[%s765 + $0x60] sm:$0xff]
        %v779 = vld [vmem:[%s765 + $0x68] sm:$0xff]
        %v780 = vld [vmem:[%s765 + $0x70] sm:$0xff]
        %v781 = vld [vmem:[%s765 + $0x78] sm:$0xff]
        %v782 = vld [vmem:[%s765 + $0x80] sm:$0xff]
        %v783 = vld [vmem:[%s765 + $0x88] sm:$0xff]
        %v784 = vld [vmem:[%s765 + $0x90] sm:$0xff]
        %v785 = vld [vmem:[%s765 + $0x98] sm:$0xff]
        %v786 = vld [vmem:[%s765 + $0xa0] sm:$0xff]
        %v787 = vld [vmem:[%s765 + $0xa8] sm:$0xff]
        %v788 = vld [vmem:[%s765 + $0xb0] sm:$0xff]
        %v789 = vld [vmem:[%s765 + $0xb8] sm:$0xff]
        %v790 = vunpack.c.l.s8.bf16 %v766
        %v791 = vunpack.c.l.s8.bf16 %v767
        %v792 = vunpack.c.l.s8.bf16 %v768
        %v793 = vunpack.c.h.s8.bf16 %v766
        %v794 = vunpack.c.h.s8.bf16 %v767
        %v795 = vunpack.c.h.s8.bf16 %v768
        %v796 = vunpack.c.l.s8.bf16 %v769
        %v797 = vunpack.c.l.s8.bf16 %v770
        %v798 = vunpack.c.l.s8.bf16 %v771
        %v799 = vunpack.c.h.s8.bf16 %v769
        %v800 = vunpack.c.h.s8.bf16 %v770
        %v801 = vunpack.c.h.s8.bf16 %v771
        %v802 = vunpack.c.l.s8.bf16 %v772
        %v803 = vunpack.c.l.s8.bf16 %v773
        %v804 = vunpack.c.l.s8.bf16 %v774
        %v805 = vunpack.c.h.s8.bf16 %v772
        %v806 = vunpack.c.h.s8.bf16 %v773
        %v807 = vunpack.c.h.s8.bf16 %v774
        %v808 = vunpack.c.l.s8.bf16 %v775
        %v809 = vunpack.c.l.s8.bf16 %v776
        %v810 = vunpack.c.l.s8.bf16 %v777
        %v811 = vunpack.c.h.s8.bf16 %v775
        %v812 = vunpack.c.h.s8.bf16 %v776
        %v813 = vunpack.c.h.s8.bf16 %v777
        %v814 = vunpack.c.l.s8.bf16 %v778
        %v815 = vunpack.c.l.s8.bf16 %v779
        %v816 = vunpack.c.l.s8.bf16 %v780
        %v817 = vunpack.c.h.s8.bf16 %v778
        %v818 = vunpack.c.h.s8.bf16 %v779
        %v819 = vunpack.c.h.s8.bf16 %v780
        %v820 = vunpack.c.l.s8.bf16 %v781
        %v821 = vunpack.c.l.s8.bf16 %v782
        %v822 = vunpack.c.l.s8.bf16 %v783
        %v823 = vunpack.c.h.s8.bf16 %v781
        %v824 = vunpack.c.h.s8.bf16 %v782
        %v825 = vunpack.c.h.s8.bf16 %v783
        %v826 = vunpack.c.l.s8.bf16 %v784
        %v827 = vunpack.c.l.s8.bf16 %v785
        %v828 = vunpack.c.l.s8.bf16 %v786
        %v829 = vunpack.c.h.s8.bf16 %v784
        %v830 = vunpack.c.h.s8.bf16 %v785
        %v831 = vunpack.c.h.s8.bf16 %v786
        %v832 = vunpack.c.l.s8.bf16 %v787
        %v833 = vunpack.c.l.s8.bf16 %v788
        %v834 = vunpack.c.l.s8.bf16 %v789
        %v835 = vunpack.c.h.s8.bf16 %v787
        %v836 = vunpack.c.h.s8.bf16 %v788
        %v837 = vunpack.c.h.s8.bf16 %v789
        %v838 = vrot.slane %v582, 2
        %v839 = vrot.slane %v584, 1
        %v840 = vsel %vm587, %v839, %v838
        %v841 = vrot.slane %v583, 2
        %v842 = vrot.slane %v585, 1
        %v843 = vsel %vm587, %v842, %v841
        %v844 = vpack.c.b16 %v840, %v840
        %v845 = vpack.c.b16 %v843, %v843
        %848 = vmatprep.subr.bf16.mxu0 %v812
        %849 = vmatpush1.bf16.msra.mxu0 %v811
        %850 = vmatprep.subr.bf16.mxu0 %v809
        %851 = vmatpush1.bf16.msra.mxu0 %v808
        %852 = vmatprep.subr.bf16.mxu0 %v806
        %853 = vmatpush1.bf16.msra.mxu0 %v805
        %854 = vmatprep.subr.bf16.mxu0 %v803
        %855 = vmatpush1.bf16.msra.mxu0 %v802
        %856 = vmatprep.subr.bf16.mxu0 %v800
        %857 = vmatpush1.bf16.msra.mxu0 %v799
        %858 = vmatprep.subr.bf16.mxu0 %v797
        %859 = vmatpush1.bf16.msra.mxu0 %v796
        %860 = vmatprep.subr.bf16.mxu0 %v794
        %861 = vmatpush1.bf16.msra.mxu0 %v793
        %862 = vmatprep.subr.bf16.mxu0 %v791
        %863 = vmatpush1.bf16.msra.mxu0 %v790
        %864 = vmatprep.subr.bf16.mxu0 %v836
        %865 = vmatpush2.bf16.msra.mxu0 %v835
        %866 = vmatprep.subr.bf16.mxu0 %v833
        %867 = vmatpush2.bf16.msra.mxu0 %v832
        %868 = vmatprep.subr.bf16.mxu0 %v830
        %869 = vmatpush2.bf16.msra.mxu0 %v829
        %870 = vmatprep.subr.bf16.mxu0 %v827
        %871 = vmatpush2.bf16.msra.mxu0 %v826
        %872 = vmatprep.subr.bf16.mxu0 %v824
        %873 = vmatpush2.bf16.msra.mxu0 %v823
        %874 = vmatprep.subr.bf16.mxu0 %v821
        %875 = vmatpush2.bf16.msra.mxu0 %v820
        %876 = vmatprep.subr.bf16.mxu0 %v818
        %877 = vmatpush2.bf16.msra.mxu0 %v817
        %878 = vmatprep.subr.bf16.mxu0 %v815
        %879 = vmatpush2.bf16.msra.mxu0 %v814
        %880 = vmatprep.mubr.bf16.mxu0 %v845
        %881 = vmatmul.mubr.bf16.gmra.mxu0 %v844
        %v882 = vpop.f32.mrf.mxu0
        %v883 = vadd.f32 0.0, %v882
        %v884 = vpop.f32.mrf.mxu0
        %v885 = vadd.f32 0.0, %v884
        %v886 = vpop.f32.mrf.mxu0
        %v887 = vpop.f32.mrf.mxu0
        %888 = vdwg.mxu0
        %889 = vmatprep.subr.bf16.mxu0 0
        %890 = vmatpush1.bf16.msra.mxu0 %v813
        %891 = vmatprep.subr.bf16.mxu0 0
        %892 = vmatpush1.bf16.msra.mxu0 %v810
        %893 = vmatprep.subr.bf16.mxu0 0
        %894 = vmatpush1.bf16.msra.mxu0 %v807
        %895 = vmatprep.subr.bf16.mxu0 0
        %896 = vmatpush1.bf16.msra.mxu0 %v804
        %897 = vmatprep.subr.bf16.mxu0 0
        %898 = vmatpush1.bf16.msra.mxu0 %v801
        %899 = vmatprep.subr.bf16.mxu0 0
        %900 = vmatpush1.bf16.msra.mxu0 %v798
        %901 = vmatprep.subr.bf16.mxu0 0
        %902 = vmatpush1.bf16.msra.mxu0 %v795
        %903 = vmatprep.subr.bf16.mxu0 0
        %904 = vmatpush1.bf16.msra.mxu0 %v792
        %905 = vmatprep.subr.bf16.mxu0 0
        %906 = vmatpush2.bf16.msra.mxu0 %v837
        %907 = vmatprep.subr.bf16.mxu0 0
        %908 = vmatpush2.bf16.msra.mxu0 %v834
        %909 = vmatprep.subr.bf16.mxu0 0
        %910 = vmatpush2.bf16.msra.mxu0 %v831
        %911 = vmatprep.subr.bf16.mxu0 0
        %912 = vmatpush2.bf16.msra.mxu0 %v828
        %913 = vmatprep.subr.bf16.mxu0 0
        %914 = vmatpush2.bf16.msra.mxu0 %v825
        %915 = vmatprep.subr.bf16.mxu0 0
        %916 = vmatpush2.bf16.msra.mxu0 %v822
        %917 = vmatprep.subr.bf16.mxu0 0
        %918 = vmatpush2.bf16.msra.mxu0 %v819
        %919 = vmatprep.subr.bf16.mxu0 0
        %920 = vmatpush2.bf16.msra.mxu0 %v816
        %921 = vmatprep.mubr.bf16.mxu0 %v845
        %922 = vmatmul.mubr.bf16.gmra.mxu0 %v844
        %v923 = vpop.f32.mrf.mxu0
        %v924 = vadd.f32 0.0, %v923
        %v925 = vpop.f32.mrf.mxu0
        %v926 = vpop.f32.mrf.mxu0
        %v927 = vpop.f32.mrf.mxu0
        %928 = vdwg.mxu0
        %v929 = vadd.f32 %v719, %v883
        %v930 = vadd.f32 %v721, %v885
        %v931 = vadd.f32 %v760, %v924
        %s932 = scalar_lea.vmem %s306, 576 [#allocation7]
        %v933 = vld [vmem:[%s932] sm:$0xff]
        %v934 = vld [vmem:[%s932 + $0x8] sm:$0xff]
        %v935 = vld [vmem:[%s932 + $0x10] sm:$0xff]
        %v936 = vld [vmem:[%s932 + $0x18] sm:$0xff]
        %v937 = vld [vmem:[%s932 + $0x20] sm:$0xff]
        %v938 = vld [vmem:[%s932 + $0x28] sm:$0xff]
        %v939 = vld [vmem:[%s932 + $0x30] sm:$0xff]
        %v940 = vld [vmem:[%s932 + $0x38] sm:$0xff]
        %v941 = vld [vmem:[%s932 + $0x40] sm:$0xff]
        %v942 = vld [vmem:[%s932 + $0x48] sm:$0xff]
        %v943 = vld [vmem:[%s932 + $0x50] sm:$0xff]
        %v944 = vld [vmem:[%s932 + $0x58] sm:$0xff]
        %v945 = vld [vmem:[%s932 + $0x60] sm:$0xff]
        %v946 = vld [vmem:[%s932 + $0x68] sm:$0xff]
        %v947 = vld [vmem:[%s932 + $0x70] sm:$0xff]
        %v948 = vld [vmem:[%s932 + $0x78] sm:$0xff]
        %v949 = vld [vmem:[%s932 + $0x80] sm:$0xff]
        %v950 = vld [vmem:[%s932 + $0x88] sm:$0xff]
        %v951 = vld [vmem:[%s932 + $0x90] sm:$0xff]
        %v952 = vld [vmem:[%s932 + $0x98] sm:$0xff]
        %v953 = vld [vmem:[%s932 + $0xa0] sm:$0xff]
        %v954 = vld [vmem:[%s932 + $0xa8] sm:$0xff]
        %v955 = vld [vmem:[%s932 + $0xb0] sm:$0xff]
        %v956 = vld [vmem:[%s932 + $0xb8] sm:$0xff]
        %v957 = vunpack.c.l.s8.bf16 %v933
        %v958 = vunpack.c.l.s8.bf16 %v934
        %v959 = vunpack.c.l.s8.bf16 %v935
        %v960 = vunpack.c.h.s8.bf16 %v933
        %v961 = vunpack.c.h.s8.bf16 %v934
        %v962 = vunpack.c.h.s8.bf16 %v935
        %v963 = vunpack.c.l.s8.bf16 %v936
        %v964 = vunpack.c.l.s8.bf16 %v937
        %v965 = vunpack.c.l.s8.bf16 %v938
        %v966 = vunpack.c.h.s8.bf16 %v936
        %v967 = vunpack.c.h.s8.bf16 %v937
        %v968 = vunpack.c.h.s8.bf16 %v938
        %v969 = vunpack.c.l.s8.bf16 %v939
        %v970 = vunpack.c.l.s8.bf16 %v940
        %v971 = vunpack.c.l.s8.bf16 %v941
        %v972 = vunpack.c.h.s8.bf16 %v939
        %v973 = vunpack.c.h.s8.bf16 %v940
        %v974 = vunpack.c.h.s8.bf16 %v941
        %v975 = vunpack.c.l.s8.bf16 %v942
        %v976 = vunpack.c.l.s8.bf16 %v943
        %v977 = vunpack.c.l.s8.bf16 %v944
        %v978 = vunpack.c.h.s8.bf16 %v942
        %v979 = vunpack.c.h.s8.bf16 %v943
        %v980 = vunpack.c.h.s8.bf16 %v944
        %v981 = vunpack.c.l.s8.bf16 %v945
        %v982 = vunpack.c.l.s8.bf16 %v946
        %v983 = vunpack.c.l.s8.bf16 %v947
        %v984 = vunpack.c.h.s8.bf16 %v945
        %v985 = vunpack.c.h.s8.bf16 %v946
        %v986 = vunpack.c.h.s8.bf16 %v947
        %v987 = vunpack.c.l.s8.bf16 %v948
        %v988 = vunpack.c.l.s8.bf16 %v949
        %v989 = vunpack.c.l.s8.bf16 %v950
        %v990 = vunpack.c.h.s8.bf16 %v948
        %v991 = vunpack.c.h.s8.bf16 %v949
        %v992 = vunpack.c.h.s8.bf16 %v950
        %v993 = vunpack.c.l.s8.bf16 %v951
        %v994 = vunpack.c.l.s8.bf16 %v952
        %v995 = vunpack.c.l.s8.bf16 %v953
        %v996 = vunpack.c.h.s8.bf16 %v951
        %v997 = vunpack.c.h.s8.bf16 %v952
        %v998 = vunpack.c.h.s8.bf16 %v953
        %v999 = vunpack.c.l.s8.bf16 %v954
        %v1000 = vunpack.c.l.s8.bf16 %v955
        %v1001 = vunpack.c.l.s8.bf16 %v956
        %v1002 = vunpack.c.h.s8.bf16 %v954
        %v1003 = vunpack.c.h.s8.bf16 %v955
        %v1004 = vunpack.c.h.s8.bf16 %v956
        %v1005 = vrot.slane %v582, 3
        %v1006 = vrot.slane %v584, 2
        %v1007 = vsel %vm587, %v1006, %v1005
        %v1008 = vrot.slane %v583, 3
        %v1009 = vrot.slane %v585, 2
        %v1010 = vsel %vm587, %v1009, %v1008
        %v1011 = vpack.c.b16 %v1007, %v1007
        %v1012 = vpack.c.b16 %v1010, %v1010
        %1015 = vmatprep.subr.bf16.mxu0 %v979
        %1016 = vmatpush1.bf16.msra.mxu0 %v978
        %1017 = vmatprep.subr.bf16.mxu0 %v976
        %1018 = vmatpush1.bf16.msra.mxu0 %v975
        %1019 = vmatprep.subr.bf16.mxu0 %v973
        %1020 = vmatpush1.bf16.msra.mxu0 %v972
        %1021 = vmatprep.subr.bf16.mxu0 %v970
        %1022 = vmatpush1.bf16.msra.mxu0 %v969
        %1023 = vmatprep.subr.bf16.mxu0 %v967
        %1024 = vmatpush1.bf16.msra.mxu0 %v966
        %1025 = vmatprep.subr.bf16.mxu0 %v964
        %1026 = vmatpush1.bf16.msra.mxu0 %v963
        %1027 = vmatprep.subr.bf16.mxu0 %v961
        %1028 = vmatpush1.bf16.msra.mxu0 %v960
        %1029 = vmatprep.subr.bf16.mxu0 %v958
        %1030 = vmatpush1.bf16.msra.mxu0 %v957
        %1031 = vmatprep.subr.bf16.mxu0 %v1003
        %1032 = vmatpush2.bf16.msra.mxu0 %v1002
        %1033 = vmatprep.subr.bf16.mxu0 %v1000
        %1034 = vmatpush2.bf16.msra.mxu0 %v999
        %1035 = vmatprep.subr.bf16.mxu0 %v997
        %1036 = vmatpush2.bf16.msra.mxu0 %v996
        %1037 = vmatprep.subr.bf16.mxu0 %v994
        %1038 = vmatpush2.bf16.msra.mxu0 %v993
        %1039 = vmatprep.subr.bf16.mxu0 %v991
        %1040 = vmatpush2.bf16.msra.mxu0 %v990
        %1041 = vmatprep.subr.bf16.mxu0 %v988
        %1042 = vmatpush2.bf16.msra.mxu0 %v987
        %1043 = vmatprep.subr.bf16.mxu0 %v985
        %1044 = vmatpush2.bf16.msra.mxu0 %v984
        %1045 = vmatprep.subr.bf16.mxu0 %v982
        %1046 = vmatpush2.bf16.msra.mxu0 %v981
        %1047 = vmatprep.mubr.bf16.mxu0 %v1012
        %1048 = vmatmul.mubr.bf16.gmra.mxu0 %v1011
        %v1049 = vpop.f32.mrf.mxu0
        %v1050 = vadd.f32 0.0, %v1049
        %v1051 = vpop.f32.mrf.mxu0
        %v1052 = vadd.f32 0.0, %v1051
        %v1053 = vpop.f32.mrf.mxu0
        %v1054 = vpop.f32.mrf.mxu0
        %1055 = vdwg.mxu0
        %1056 = vmatprep.subr.bf16.mxu0 0
        %1057 = vmatpush1.bf16.msra.mxu0 %v980
        %1058 = vmatprep.subr.bf16.mxu0 0
        %1059 = vmatpush1.bf16.msra.mxu0 %v977
        %1060 = vmatprep.subr.bf16.mxu0 0
        %1061 = vmatpush1.bf16.msra.mxu0 %v974
        %1062 = vmatprep.subr.bf16.mxu0 0
        %1063 = vmatpush1.bf16.msra.mxu0 %v971
        %1064 = vmatprep.subr.bf16.mxu0 0
        %1065 = vmatpush1.bf16.msra.mxu0 %v968
        %1066 = vmatprep.subr.bf16.mxu0 0
        %1067 = vmatpush1.bf16.msra.mxu0 %v965
        %1068 = vmatprep.subr.bf16.mxu0 0
        %1069 = vmatpush1.bf16.msra.mxu0 %v962
        %1070 = vmatprep.subr.bf16.mxu0 0
        %1071 = vmatpush1.bf16.msra.mxu0 %v959
        %1072 = vmatprep.subr.bf16.mxu0 0
        %1073 = vmatpush2.bf16.msra.mxu0 %v1004
        %1074 = vmatprep.subr.bf16.mxu0 0
        %1075 = vmatpush2.bf16.msra.mxu0 %v1001
        %1076 = vmatprep.subr.bf16.mxu0 0
        %1077 = vmatpush2.bf16.msra.mxu0 %v998
        %1078 = vmatprep.subr.bf16.mxu0 0
        %1079 = vmatpush2.bf16.msra.mxu0 %v995
        %1080 = vmatprep.subr.bf16.mxu0 0
        %1081 = vmatpush2.bf16.msra.mxu0 %v992
        %1082 = vmatprep.subr.bf16.mxu0 0
        %1083 = vmatpush2.bf16.msra.mxu0 %v989
        %1084 = vmatprep.subr.bf16.mxu0 0
        %1085 = vmatpush2.bf16.msra.mxu0 %v986
        %1086 = vmatprep.subr.bf16.mxu0 0
        %1087 = vmatpush2.bf16.msra.mxu0 %v983
        %1088 = vmatprep.mubr.bf16.mxu0 %v1012
        %1089 = vmatmul.mubr.bf16.gmra.mxu0 %v1011
        %v1090 = vpop.f32.mrf.mxu0
        %v1091 = vadd.f32 0.0, %v1090
        %v1092 = vpop.f32.mrf.mxu0
        %v1093 = vpop.f32.mrf.mxu0
        %v1094 = vpop.f32.mrf.mxu0
        %1095 = vdwg.mxu0
        %v1096 = vadd.f32 %v929, %v1050
        %v1097 = vadd.f32 %v930, %v1052
        %v1098 = vadd.f32 %v931, %v1091
        %s1099 = scalar_lea.vmem %s306, 768 [#allocation7]
        %v1100 = vld [vmem:[%s1099] sm:$0xff]
        %v1101 = vld [vmem:[%s1099 + $0x8] sm:$0xff]
        %v1102 = vld [vmem:[%s1099 + $0x10] sm:$0xff]
        %v1103 = vld [vmem:[%s1099 + $0x18] sm:$0xff]
        %v1104 = vld [vmem:[%s1099 + $0x20] sm:$0xff]
        %v1105 = vld [vmem:[%s1099 + $0x28] sm:$0xff]
        %v1106 = vld [vmem:[%s1099 + $0x30] sm:$0xff]
        %v1107 = vld [vmem:[%s1099 + $0x38] sm:$0xff]
        %v1108 = vld [vmem:[%s1099 + $0x40] sm:$0xff]
        %v1109 = vld [vmem:[%s1099 + $0x48] sm:$0xff]
        %v1110 = vld [vmem:[%s1099 + $0x50] sm:$0xff]
        %v1111 = vld [vmem:[%s1099 + $0x58] sm:$0xff]
        %v1112 = vld [vmem:[%s1099 + $0x60] sm:$0xff]
        %v1113 = vld [vmem:[%s1099 + $0x68] sm:$0xff]
        %v1114 = vld [vmem:[%s1099 + $0x70] sm:$0xff]
        %v1115 = vld [vmem:[%s1099 + $0x78] sm:$0xff]
        %v1116 = vld [vmem:[%s1099 + $0x80] sm:$0xff]
        %v1117 = vld [vmem:[%s1099 + $0x88] sm:$0xff]
        %v1118 = vld [vmem:[%s1099 + $0x90] sm:$0xff]
        %v1119 = vld [vmem:[%s1099 + $0x98] sm:$0xff]
        %v1120 = vld [vmem:[%s1099 + $0xa0] sm:$0xff]
        %v1121 = vld [vmem:[%s1099 + $0xa8] sm:$0xff]
        %v1122 = vld [vmem:[%s1099 + $0xb0] sm:$0xff]
        %v1123 = vld [vmem:[%s1099 + $0xb8] sm:$0xff]
        %v1124 = vunpack.c.l.s8.bf16 %v1100
        %v1125 = vunpack.c.l.s8.bf16 %v1101
        %v1126 = vunpack.c.l.s8.bf16 %v1102
        %v1127 = vunpack.c.h.s8.bf16 %v1100
        %v1128 = vunpack.c.h.s8.bf16 %v1101
        %v1129 = vunpack.c.h.s8.bf16 %v1102
        %v1130 = vunpack.c.l.s8.bf16 %v1103
        %v1131 = vunpack.c.l.s8.bf16 %v1104
        %v1132 = vunpack.c.l.s8.bf16 %v1105
        %v1133 = vunpack.c.h.s8.bf16 %v1103
        %v1134 = vunpack.c.h.s8.bf16 %v1104
        %v1135 = vunpack.c.h.s8.bf16 %v1105
        %v1136 = vunpack.c.l.s8.bf16 %v1106
        %v1137 = vunpack.c.l.s8.bf16 %v1107
        %v1138 = vunpack.c.l.s8.bf16 %v1108
        %v1139 = vunpack.c.h.s8.bf16 %v1106
        %v1140 = vunpack.c.h.s8.bf16 %v1107
        %v1141 = vunpack.c.h.s8.bf16 %v1108
        %v1142 = vunpack.c.l.s8.bf16 %v1109
        %v1143 = vunpack.c.l.s8.bf16 %v1110
        %v1144 = vunpack.c.l.s8.bf16 %v1111
        %v1145 = vunpack.c.h.s8.bf16 %v1109
        %v1146 = vunpack.c.h.s8.bf16 %v1110
        %v1147 = vunpack.c.h.s8.bf16 %v1111
        %v1148 = vunpack.c.l.s8.bf16 %v1112
        %v1149 = vunpack.c.l.s8.bf16 %v1113
        %v1150 = vunpack.c.l.s8.bf16 %v1114
        %v1151 = vunpack.c.h.s8.bf16 %v1112
        %v1152 = vunpack.c.h.s8.bf16 %v1113
        %v1153 = vunpack.c.h.s8.bf16 %v1114
        %v1154 = vunpack.c.l.s8.bf16 %v1115
        %v1155 = vunpack.c.l.s8.bf16 %v1116
        %v1156 = vunpack.c.l.s8.bf16 %v1117
        %v1157 = vunpack.c.h.s8.bf16 %v1115
        %v1158 = vunpack.c.h.s8.bf16 %v1116
        %v1159 = vunpack.c.h.s8.bf16 %v1117
        %v1160 = vunpack.c.l.s8.bf16 %v1118
        %v1161 = vunpack.c.l.s8.bf16 %v1119
        %v1162 = vunpack.c.l.s8.bf16 %v1120
        %v1163 = vunpack.c.h.s8.bf16 %v1118
        %v1164 = vunpack.c.h.s8.bf16 %v1119
        %v1165 = vunpack.c.h.s8.bf16 %v1120
        %v1166 = vunpack.c.l.s8.bf16 %v1121
        %v1167 = vunpack.c.l.s8.bf16 %v1122
        %v1168 = vunpack.c.l.s8.bf16 %v1123
        %v1169 = vunpack.c.h.s8.bf16 %v1121
        %v1170 = vunpack.c.h.s8.bf16 %v1122
        %v1171 = vunpack.c.h.s8.bf16 %v1123
        %v1172 = vrot.slane %v582, 4
        %v1173 = vrot.slane %v584, 3
        %v1174 = vsel %vm587, %v1173, %v1172
        %v1175 = vrot.slane %v583, 4
        %v1176 = vrot.slane %v585, 3
        %v1177 = vsel %vm587, %v1176, %v1175
        %v1178 = vpack.c.b16 %v1174, %v1174
        %v1179 = vpack.c.b16 %v1177, %v1177
        %1182 = vmatprep.subr.bf16.mxu0 %v1146
        %1183 = vmatpush1.bf16.msra.mxu0 %v1145
        %1184 = vmatprep.subr.bf16.mxu0 %v1143
        %1185 = vmatpush1.bf16.msra.mxu0 %v1142
        %1186 = vmatprep.subr.bf16.mxu0 %v1140
        %1187 = vmatpush1.bf16.msra.mxu0 %v1139
        %1188 = vmatprep.subr.bf16.mxu0 %v1137
        %1189 = vmatpush1.bf16.msra.mxu0 %v1136
        %1190 = vmatprep.subr.bf16.mxu0 %v1134
        %1191 = vmatpush1.bf16.msra.mxu0 %v1133
        %1192 = vmatprep.subr.bf16.mxu0 %v1131
        %1193 = vmatpush1.bf16.msra.mxu0 %v1130
        %1194 = vmatprep.subr.bf16.mxu0 %v1128
        %1195 = vmatpush1.bf16.msra.mxu0 %v1127
        %1196 = vmatprep.subr.bf16.mxu0 %v1125
        %1197 = vmatpush1.bf16.msra.mxu0 %v1124
        %1198 = vmatprep.subr.bf16.mxu0 %v1170
        %1199 = vmatpush2.bf16.msra.mxu0 %v1169
        %1200 = vmatprep.subr.bf16.mxu0 %v1167
        %1201 = vmatpush2.bf16.msra.mxu0 %v1166
        %1202 = vmatprep.subr.bf16.mxu0 %v1164
        %1203 = vmatpush2.bf16.msra.mxu0 %v1163
        %1204 = vmatprep.subr.bf16.mxu0 %v1161
        %1205 = vmatpush2.bf16.msra.mxu0 %v1160
        %1206 = vmatprep.subr.bf16.mxu0 %v1158
        %1207 = vmatpush2.bf16.msra.mxu0 %v1157
        %1208 = vmatprep.subr.bf16.mxu0 %v1155
        %1209 = vmatpush2.bf16.msra.mxu0 %v1154
        %1210 = vmatprep.subr.bf16.mxu0 %v1152
        %1211 = vmatpush2.bf16.msra.mxu0 %v1151
        %1212 = vmatprep.subr.bf16.mxu0 %v1149
        %1213 = vmatpush2.bf16.msra.mxu0 %v1148
        %1214 = vmatprep.mubr.bf16.mxu0 %v1179
        %1215 = vmatmul.mubr.bf16.gmra.mxu0 %v1178
        %v1216 = vpop.f32.mrf.mxu0
        %v1217 = vadd.f32 0.0, %v1216
        %v1218 = vpop.f32.mrf.mxu0
        %v1219 = vadd.f32 0.0, %v1218
        %v1220 = vpop.f32.mrf.mxu0
        %v1221 = vpop.f32.mrf.mxu0
        %1222 = vdwg.mxu0
        %1223 = vmatprep.subr.bf16.mxu0 0
        %1224 = vmatpush1.bf16.msra.mxu0 %v1147
        %1225 = vmatprep.subr.bf16.mxu0 0
        %1226 = vmatpush1.bf16.msra.mxu0 %v1144
        %1227 = vmatprep.subr.bf16.mxu0 0
        %1228 = vmatpush1.bf16.msra.mxu0 %v1141
        %1229 = vmatprep.subr.bf16.mxu0 0
        %1230 = vmatpush1.bf16.msra.mxu0 %v1138
        %1231 = vmatprep.subr.bf16.mxu0 0
        %1232 = vmatpush1.bf16.msra.mxu0 %v1135
        %1233 = vmatprep.subr.bf16.mxu0 0
        %1234 = vmatpush1.bf16.msra.mxu0 %v1132
        %1235 = vmatprep.subr.bf16.mxu0 0
        %1236 = vmatpush1.bf16.msra.mxu0 %v1129
        %1237 = vmatprep.subr.bf16.mxu0 0
        %1238 = vmatpush1.bf16.msra.mxu0 %v1126
        %1239 = vmatprep.subr.bf16.mxu0 0
        %1240 = vmatpush2.bf16.msra.mxu0 %v1171
        %1241 = vmatprep.subr.bf16.mxu0 0
        %1242 = vmatpush2.bf16.msra.mxu0 %v1168
        %1243 = vmatprep.subr.bf16.mxu0 0
        %1244 = vmatpush2.bf16.msra.mxu0 %v1165
        %1245 = vmatprep.subr.bf16.mxu0 0
        %1246 = vmatpush2.bf16.msra.mxu0 %v1162
        %1247 = vmatprep.subr.bf16.mxu0 0
        %1248 = vmatpush2.bf16.msra.mxu0 %v1159
        %1249 = vmatprep.subr.bf16.mxu0 0
        %1250 = vmatpush2.bf16.msra.mxu0 %v1156
        %1251 = vmatprep.subr.bf16.mxu0 0
        %1252 = vmatpush2.bf16.msra.mxu0 %v1153
        %1253 = vmatprep.subr.bf16.mxu0 0
        %1254 = vmatpush2.bf16.msra.mxu0 %v1150
        %1255 = vmatprep.mubr.bf16.mxu0 %v1179
        %1256 = vmatmul.mubr.bf16.gmra.mxu0 %v1178
        %v1257 = vpop.f32.mrf.mxu0
        %v1258 = vadd.f32 0.0, %v1257
        %v1259 = vpop.f32.mrf.mxu0
        %v1260 = vpop.f32.mrf.mxu0
        %v1261 = vpop.f32.mrf.mxu0
        %1262 = vdwg.mxu0
        %v1263 = vadd.f32 %v1096, %v1217
        %v1264 = vadd.f32 %v1097, %v1219
        %v1265 = vadd.f32 %v1098, %v1258
        %s1266 = scalar_lea.vmem %s306, 960 [#allocation7]
        %v1267 = vld [vmem:[%s1266] sm:$0xff]
        %v1268 = vld [vmem:[%s1266 + $0x8] sm:$0xff]
        %v1269 = vld [vmem:[%s1266 + $0x10] sm:$0xff]
        %v1270 = vld [vmem:[%s1266 + $0x18] sm:$0xff]
        %v1271 = vld [vmem:[%s1266 + $0x20] sm:$0xff]
        %v1272 = vld [vmem:[%s1266 + $0x28] sm:$0xff]
        %v1273 = vld [vmem:[%s1266 + $0x30] sm:$0xff]
        %v1274 = vld [vmem:[%s1266 + $0x38] sm:$0xff]
        %v1275 = vld [vmem:[%s1266 + $0x40] sm:$0xff]
        %v1276 = vld [vmem:[%s1266 + $0x48] sm:$0xff]
        %v1277 = vld [vmem:[%s1266 + $0x50] sm:$0xff]
        %v1278 = vld [vmem:[%s1266 + $0x58] sm:$0xff]
        %v1279 = vld [vmem:[%s1266 + $0x60] sm:$0xff]
        %v1280 = vld [vmem:[%s1266 + $0x68] sm:$0xff]
        %v1281 = vld [vmem:[%s1266 + $0x70] sm:$0xff]
        %v1282 = vld [vmem:[%s1266 + $0x78] sm:$0xff]
        %v1283 = vld [vmem:[%s1266 + $0x80] sm:$0xff]
        %v1284 = vld [vmem:[%s1266 + $0x88] sm:$0xff]
        %v1285 = vld [vmem:[%s1266 + $0x90] sm:$0xff]
        %v1286 = vld [vmem:[%s1266 + $0x98] sm:$0xff]
        %v1287 = vld [vmem:[%s1266 + $0xa0] sm:$0xff]
        %v1288 = vld [vmem:[%s1266 + $0xa8] sm:$0xff]
        %v1289 = vld [vmem:[%s1266 + $0xb0] sm:$0xff]
        %v1290 = vld [vmem:[%s1266 + $0xb8] sm:$0xff]
        %v1291 = vunpack.c.l.s8.bf16 %v1267
        %v1292 = vunpack.c.l.s8.bf16 %v1268
        %v1293 = vunpack.c.l.s8.bf16 %v1269
        %v1294 = vunpack.c.h.s8.bf16 %v1267
        %v1295 = vunpack.c.h.s8.bf16 %v1268
        %v1296 = vunpack.c.h.s8.bf16 %v1269
        %v1297 = vunpack.c.l.s8.bf16 %v1270
        %v1298 = vunpack.c.l.s8.bf16 %v1271
        %v1299 = vunpack.c.l.s8.bf16 %v1272
        %v1300 = vunpack.c.h.s8.bf16 %v1270
        %v1301 = vunpack.c.h.s8.bf16 %v1271
        %v1302 = vunpack.c.h.s8.bf16 %v1272
        %v1303 = vunpack.c.l.s8.bf16 %v1273
        %v1304 = vunpack.c.l.s8.bf16 %v1274
        %v1305 = vunpack.c.l.s8.bf16 %v1275
        %v1306 = vunpack.c.h.s8.bf16 %v1273
        %v1307 = vunpack.c.h.s8.bf16 %v1274
        %v1308 = vunpack.c.h.s8.bf16 %v1275
        %v1309 = vunpack.c.l.s8.bf16 %v1276
        %v1310 = vunpack.c.l.s8.bf16 %v1277
        %v1311 = vunpack.c.l.s8.bf16 %v1278
        %v1312 = vunpack.c.h.s8.bf16 %v1276
        %v1313 = vunpack.c.h.s8.bf16 %v1277
        %v1314 = vunpack.c.h.s8.bf16 %v1278
        %v1315 = vunpack.c.l.s8.bf16 %v1279
        %v1316 = vunpack.c.l.s8.bf16 %v1280
        %v1317 = vunpack.c.l.s8.bf16 %v1281
        %v1318 = vunpack.c.h.s8.bf16 %v1279
        %v1319 = vunpack.c.h.s8.bf16 %v1280
        %v1320 = vunpack.c.h.s8.bf16 %v1281
        %v1321 = vunpack.c.l.s8.bf16 %v1282
        %v1322 = vunpack.c.l.s8.bf16 %v1283
        %v1323 = vunpack.c.l.s8.bf16 %v1284
        %v1324 = vunpack.c.h.s8.bf16 %v1282
        %v1325 = vunpack.c.h.s8.bf16 %v1283
        %v1326 = vunpack.c.h.s8.bf16 %v1284
        %v1327 = vunpack.c.l.s8.bf16 %v1285
        %v1328 = vunpack.c.l.s8.bf16 %v1286
        %v1329 = vunpack.c.l.s8.bf16 %v1287
        %v1330 = vunpack.c.h.s8.bf16 %v1285
        %v1331 = vunpack.c.h.s8.bf16 %v1286
        %v1332 = vunpack.c.h.s8.bf16 %v1287
        %v1333 = vunpack.c.l.s8.bf16 %v1288
        %v1334 = vunpack.c.l.s8.bf16 %v1289
        %v1335 = vunpack.c.l.s8.bf16 %v1290
        %v1336 = vunpack.c.h.s8.bf16 %v1288
        %v1337 = vunpack.c.h.s8.bf16 %v1289
        %v1338 = vunpack.c.h.s8.bf16 %v1290
        %v1339 = vrot.slane %v582, 5
        %v1340 = vrot.slane %v584, 4
        %v1341 = vsel %vm587, %v1340, %v1339
        %v1342 = vrot.slane %v583, 5
        %v1343 = vrot.slane %v585, 4
        %v1344 = vsel %vm587, %v1343, %v1342
        %v1345 = vpack.c.b16 %v1341, %v1341
        %v1346 = vpack.c.b16 %v1344, %v1344
        %1349 = vmatprep.subr.bf16.mxu0 %v1313
        %1350 = vmatpush1.bf16.msra.mxu0 %v1312
        %1351 = vmatprep.subr.bf16.mxu0 %v1310
        %1352 = vmatpush1.bf16.msra.mxu0 %v1309
        %1353 = vmatprep.subr.bf16.mxu0 %v1307
        %1354 = vmatpush1.bf16.msra.mxu0 %v1306
        %1355 = vmatprep.subr.bf16.mxu0 %v1304
        %1356 = vmatpush1.bf16.msra.mxu0 %v1303
        %1357 = vmatprep.subr.bf16.mxu0 %v1301
        %1358 = vmatpush1.bf16.msra.mxu0 %v1300
        %1359 = vmatprep.subr.bf16.mxu0 %v1298
        %1360 = vmatpush1.bf16.msra.mxu0 %v1297
        %1361 = vmatprep.subr.bf16.mxu0 %v1295
        %1362 = vmatpush1.bf16.msra.mxu0 %v1294
        %1363 = vmatprep.subr.bf16.mxu0 %v1292
        %1364 = vmatpush1.bf16.msra.mxu0 %v1291
        %1365 = vmatprep.subr.bf16.mxu0 %v1337
        %1366 = vmatpush2.bf16.msra.mxu0 %v1336
        %1367 = vmatprep.subr.bf16.mxu0 %v1334
        %1368 = vmatpush2.bf16.msra.mxu0 %v1333
        %1369 = vmatprep.subr.bf16.mxu0 %v1331
        %1370 = vmatpush2.bf16.msra.mxu0 %v1330
        %1371 = vmatprep.subr.bf16.mxu0 %v1328
        %1372 = vmatpush2.bf16.msra.mxu0 %v1327
        %1373 = vmatprep.subr.bf16.mxu0 %v1325
        %1374 = vmatpush2.bf16.msra.mxu0 %v1324
        %1375 = vmatprep.subr.bf16.mxu0 %v1322
        %1376 = vmatpush2.bf16.msra.mxu0 %v1321
        %1377 = vmatprep.subr.bf16.mxu0 %v1319
        %1378 = vmatpush2.bf16.msra.mxu0 %v1318
        %1379 = vmatprep.subr.bf16.mxu0 %v1316
        %1380 = vmatpush2.bf16.msra.mxu0 %v1315
        %1381 = vmatprep.mubr.bf16.mxu0 %v1346
        %1382 = vmatmul.mubr.bf16.gmra.mxu0 %v1345
        %v1383 = vpop.f32.mrf.mxu0
        %v1384 = vadd.f32 0.0, %v1383
        %v1385 = vpop.f32.mrf.mxu0
        %v1386 = vadd.f32 0.0, %v1385
        %v1387 = vpop.f32.mrf.mxu0
        %v1388 = vpop.f32.mrf.mxu0
        %1389 = vdwg.mxu0
        %1390 = vmatprep.subr.bf16.mxu0 0
        %1391 = vmatpush1.bf16.msra.mxu0 %v1314
        %1392 = vmatprep.subr.bf16.mxu0 0
        %1393 = vmatpush1.bf16.msra.mxu0 %v1311
        %1394 = vmatprep.subr.bf16.mxu0 0
        %1395 = vmatpush1.bf16.msra.mxu0 %v1308
        %1396 = vmatprep.subr.bf16.mxu0 0
        %1397 = vmatpush1.bf16.msra.mxu0 %v1305
        %1398 = vmatprep.subr.bf16.mxu0 0
        %1399 = vmatpush1.bf16.msra.mxu0 %v1302
        %1400 = vmatprep.subr.bf16.mxu0 0
        %1401 = vmatpush1.bf16.msra.mxu0 %v1299
        %1402 = vmatprep.subr.bf16.mxu0 0
        %1403 = vmatpush1.bf16.msra.mxu0 %v1296
        %1404 = vmatprep.subr.bf16.mxu0 0
        %1405 = vmatpush1.bf16.msra.mxu0 %v1293
        %1406 = vmatprep.subr.bf16.mxu0 0
        %1407 = vmatpush2.bf16.msra.mxu0 %v1338
        %1408 = vmatprep.subr.bf16.mxu0 0
        %1409 = vmatpush2.bf16.msra.mxu0 %v1335
        %1410 = vmatprep.subr.bf16.mxu0 0
        %1411 = vmatpush2.bf16.msra.mxu0 %v1332
        %1412 = vmatprep.subr.bf16.mxu0 0
        %1413 = vmatpush2.bf16.msra.mxu0 %v1329
        %1414 = vmatprep.subr.bf16.mxu0 0
        %1415 = vmatpush2.bf16.msra.mxu0 %v1326
        %1416 = vmatprep.subr.bf16.mxu0 0
        %1417 = vmatpush2.bf16.msra.mxu0 %v1323
        %1418 = vmatprep.subr.bf16.mxu0 0
        %1419 = vmatpush2.bf16.msra.mxu0 %v1320
        %1420 = vmatprep.subr.bf16.mxu0 0
        %1421 = vmatpush2.bf16.msra.mxu0 %v1317
        %1422 = vmatprep.mubr.bf16.mxu0 %v1346
        %1423 = vmatmul.mubr.bf16.gmra.mxu0 %v1345
        %v1424 = vpop.f32.mrf.mxu0
        %v1425 = vadd.f32 0.0, %v1424
        %v1426 = vpop.f32.mrf.mxu0
        %v1427 = vpop.f32.mrf.mxu0
        %v1428 = vpop.f32.mrf.mxu0
        %1429 = vdwg.mxu0
        %v1430 = vadd.f32 %v1263, %v1384
        %v1431 = vadd.f32 %v1264, %v1386
        %v1432 = vadd.f32 %v1265, %v1425
        %s1433 = scalar_lea.vmem %s306, 1152 [#allocation7]
        %v1434 = vld [vmem:[%s1433] sm:$0xff]
        %v1435 = vld [vmem:[%s1433 + $0x8] sm:$0xff]
        %v1436 = vld [vmem:[%s1433 + $0x10] sm:$0xff]
        %v1437 = vld [vmem:[%s1433 + $0x18] sm:$0xff]
        %v1438 = vld [vmem:[%s1433 + $0x20] sm:$0xff]
        %v1439 = vld [vmem:[%s1433 + $0x28] sm:$0xff]
        %v1440 = vld [vmem:[%s1433 + $0x30] sm:$0xff]
        %v1441 = vld [vmem:[%s1433 + $0x38] sm:$0xff]
        %v1442 = vld [vmem:[%s1433 + $0x40] sm:$0xff]
        %v1443 = vld [vmem:[%s1433 + $0x48] sm:$0xff]
        %v1444 = vld [vmem:[%s1433 + $0x50] sm:$0xff]
        %v1445 = vld [vmem:[%s1433 + $0x58] sm:$0xff]
        %v1446 = vld [vmem:[%s1433 + $0x60] sm:$0xff]
        %v1447 = vld [vmem:[%s1433 + $0x68] sm:$0xff]
        %v1448 = vld [vmem:[%s1433 + $0x70] sm:$0xff]
        %v1449 = vld [vmem:[%s1433 + $0x78] sm:$0xff]
        %v1450 = vld [vmem:[%s1433 + $0x80] sm:$0xff]
        %v1451 = vld [vmem:[%s1433 + $0x88] sm:$0xff]
        %v1452 = vld [vmem:[%s1433 + $0x90] sm:$0xff]
        %v1453 = vld [vmem:[%s1433 + $0x98] sm:$0xff]
        %v1454 = vld [vmem:[%s1433 + $0xa0] sm:$0xff]
        %v1455 = vld [vmem:[%s1433 + $0xa8] sm:$0xff]
        %v1456 = vld [vmem:[%s1433 + $0xb0] sm:$0xff]
        %v1457 = vld [vmem:[%s1433 + $0xb8] sm:$0xff]
        %v1458 = vunpack.c.l.s8.bf16 %v1434
        %v1459 = vunpack.c.l.s8.bf16 %v1435
        %v1460 = vunpack.c.l.s8.bf16 %v1436
        %v1461 = vunpack.c.h.s8.bf16 %v1434
        %v1462 = vunpack.c.h.s8.bf16 %v1435
        %v1463 = vunpack.c.h.s8.bf16 %v1436
        %v1464 = vunpack.c.l.s8.bf16 %v1437
        %v1465 = vunpack.c.l.s8.bf16 %v1438
        %v1466 = vunpack.c.l.s8.bf16 %v1439
        %v1467 = vunpack.c.h.s8.bf16 %v1437
        %v1468 = vunpack.c.h.s8.bf16 %v1438
        %v1469 = vunpack.c.h.s8.bf16 %v1439
        %v1470 = vunpack.c.l.s8.bf16 %v1440
        %v1471 = vunpack.c.l.s8.bf16 %v1441
        %v1472 = vunpack.c.l.s8.bf16 %v1442
        %v1473 = vunpack.c.h.s8.bf16 %v1440
        %v1474 = vunpack.c.h.s8.bf16 %v1441
        %v1475 = vunpack.c.h.s8.bf16 %v1442
        %v1476 = vunpack.c.l.s8.bf16 %v1443
        %v1477 = vunpack.c.l.s8.bf16 %v1444
        %v1478 = vunpack.c.l.s8.bf16 %v1445
        %v1479 = vunpack.c.h.s8.bf16 %v1443
        %v1480 = vunpack.c.h.s8.bf16 %v1444
        %v1481 = vunpack.c.h.s8.bf16 %v1445
        %v1482 = vunpack.c.l.s8.bf16 %v1446
        %v1483 = vunpack.c.l.s8.bf16 %v1447
        %v1484 = vunpack.c.l.s8.bf16 %v1448
        %v1485 = vunpack.c.h.s8.bf16 %v1446
        %v1486 = vunpack.c.h.s8.bf16 %v1447
        %v1487 = vunpack.c.h.s8.bf16 %v1448
        %v1488 = vunpack.c.l.s8.bf16 %v1449
        %v1489 = vunpack.c.l.s8.bf16 %v1450
        %v1490 = vunpack.c.l.s8.bf16 %v1451
        %v1491 = vunpack.c.h.s8.bf16 %v1449
        %v1492 = vunpack.c.h.s8.bf16 %v1450
        %v1493 = vunpack.c.h.s8.bf16 %v1451
        %v1494 = vunpack.c.l.s8.bf16 %v1452
        %v1495 = vunpack.c.l.s8.bf16 %v1453
        %v1496 = vunpack.c.l.s8.bf16 %v1454
        %v1497 = vunpack.c.h.s8.bf16 %v1452
        %v1498 = vunpack.c.h.s8.bf16 %v1453
        %v1499 = vunpack.c.h.s8.bf16 %v1454
        %v1500 = vunpack.c.l.s8.bf16 %v1455
        %v1501 = vunpack.c.l.s8.bf16 %v1456
        %v1502 = vunpack.c.l.s8.bf16 %v1457
        %v1503 = vunpack.c.h.s8.bf16 %v1455
        %v1504 = vunpack.c.h.s8.bf16 %v1456
        %v1505 = vunpack.c.h.s8.bf16 %v1457
        %v1506 = vrot.slane %v582, 6
        %v1507 = vrot.slane %v584, 5
        %v1508 = vsel %vm587, %v1507, %v1506
        %v1509 = vrot.slane %v583, 6
        %v1510 = vrot.slane %v585, 5
        %v1511 = vsel %vm587, %v1510, %v1509
        %v1512 = vpack.c.b16 %v1508, %v1508
        %v1513 = vpack.c.b16 %v1511, %v1511
        %1516 = vmatprep.subr.bf16.mxu0 %v1480
        %1517 = vmatpush1.bf16.msra.mxu0 %v1479
        %1518 = vmatprep.subr.bf16.mxu0 %v1477
        %1519 = vmatpush1.bf16.msra.mxu0 %v1476
        %1520 = vmatprep.subr.bf16.mxu0 %v1474
        %1521 = vmatpush1.bf16.msra.mxu0 %v1473
        %1522 = vmatprep.subr.bf16.mxu0 %v1471
        %1523 = vmatpush1.bf16.msra.mxu0 %v1470
        %1524 = vmatprep.subr.bf16.mxu0 %v1468
        %1525 = vmatpush1.bf16.msra.mxu0 %v1467
        %1526 = vmatprep.subr.bf16.mxu0 %v1465
        %1527 = vmatpush1.bf16.msra.mxu0 %v1464
        %1528 = vmatprep.subr.bf16.mxu0 %v1462
        %1529 = vmatpush1.bf16.msra.mxu0 %v1461
        %1530 = vmatprep.subr.bf16.mxu0 %v1459
        %1531 = vmatpush1.bf16.msra.mxu0 %v1458
        %1532 = vmatprep.subr.bf16.mxu0 %v1504
        %1533 = vmatpush2.bf16.msra.mxu0 %v1503
        %1534 = vmatprep.subr.bf16.mxu0 %v1501
        %1535 = vmatpush2.bf16.msra.mxu0 %v1500
        %1536 = vmatprep.subr.bf16.mxu0 %v1498
        %1537 = vmatpush2.bf16.msra.mxu0 %v1497
        %1538 = vmatprep.subr.bf16.mxu0 %v1495
        %1539 = vmatpush2.bf16.msra.mxu0 %v1494
        %1540 = vmatprep.subr.bf16.mxu0 %v1492
        %1541 = vmatpush2.bf16.msra.mxu0 %v1491
        %1542 = vmatprep.subr.bf16.mxu0 %v1489
        %1543 = vmatpush2.bf16.msra.mxu0 %v1488
        %1544 = vmatprep.subr.bf16.mxu0 %v1486
        %1545 = vmatpush2.bf16.msra.mxu0 %v1485
        %1546 = vmatprep.subr.bf16.mxu0 %v1483
        %1547 = vmatpush2.bf16.msra.mxu0 %v1482
        %1548 = vmatprep.mubr.bf16.mxu0 %v1513
        %1549 = vmatmul.mubr.bf16.gmra.mxu0 %v1512
        %v1550 = vpop.f32.mrf.mxu0
        %v1551 = vadd.f32 0.0, %v1550
        %v1552 = vpop.f32.mrf.mxu0
        %v1553 = vadd.f32 0.0, %v1552
        %v1554 = vpop.f32.mrf.mxu0
        %v1555 = vpop.f32.mrf.mxu0
        %1556 = vdwg.mxu0
        %1557 = vmatprep.subr.bf16.mxu0 0
        %1558 = vmatpush1.bf16.msra.mxu0 %v1481
        %1559 = vmatprep.subr.bf16.mxu0 0
        %1560 = vmatpush1.bf16.msra.mxu0 %v1478
        %1561 = vmatprep.subr.bf16.mxu0 0
        %1562 = vmatpush1.bf16.msra.mxu0 %v1475
        %1563 = vmatprep.subr.bf16.mxu0 0
        %1564 = vmatpush1.bf16.msra.mxu0 %v1472
        %1565 = vmatprep.subr.bf16.mxu0 0
        %1566 = vmatpush1.bf16.msra.mxu0 %v1469
        %1567 = vmatprep.subr.bf16.mxu0 0
        %1568 = vmatpush1.bf16.msra.mxu0 %v1466
        %1569 = vmatprep.subr.bf16.mxu0 0
        %1570 = vmatpush1.bf16.msra.mxu0 %v1463
        %1571 = vmatprep.subr.bf16.mxu0 0
        %1572 = vmatpush1.bf16.msra.mxu0 %v1460
        %1573 = vmatprep.subr.bf16.mxu0 0
        %1574 = vmatpush2.bf16.msra.mxu0 %v1505
        %1575 = vmatprep.subr.bf16.mxu0 0
        %1576 = vmatpush2.bf16.msra.mxu0 %v1502
        %1577 = vmatprep.subr.bf16.mxu0 0
        %1578 = vmatpush2.bf16.msra.mxu0 %v1499
        %1579 = vmatprep.subr.bf16.mxu0 0
        %1580 = vmatpush2.bf16.msra.mxu0 %v1496
        %1581 = vmatprep.subr.bf16.mxu0 0
        %1582 = vmatpush2.bf16.msra.mxu0 %v1493
        %1583 = vmatprep.subr.bf16.mxu0 0
        %1584 = vmatpush2.bf16.msra.mxu0 %v1490
        %1585 = vmatprep.subr.bf16.mxu0 0
        %1586 = vmatpush2.bf16.msra.mxu0 %v1487
        %1587 = vmatprep.subr.bf16.mxu0 0
        %1588 = vmatpush2.bf16.msra.mxu0 %v1484
        %1589 = vmatprep.mubr.bf16.mxu0 %v1513
        %1590 = vmatmul.mubr.bf16.gmra.mxu0 %v1512
        %v1591 = vpop.f32.mrf.mxu0
        %v1592 = vadd.f32 0.0, %v1591
        %v1593 = vpop.f32.mrf.mxu0
        %v1594 = vpop.f32.mrf.mxu0
        %v1595 = vpop.f32.mrf.mxu0
        %1596 = vdwg.mxu0
        %v1597 = vadd.f32 %v1430, %v1551
        %v1598 = vadd.f32 %v1431, %v1553
        %v1599 = vadd.f32 %v1432, %v1592
        %s1600 = scalar_lea.vmem %s306, 1344 [#allocation7]
        %v1601 = vld [vmem:[%s1600] sm:$0xff]
        %v1602 = vld [vmem:[%s1600 + $0x8] sm:$0xff]
        %v1603 = vld [vmem:[%s1600 + $0x10] sm:$0xff]
        %v1604 = vld [vmem:[%s1600 + $0x18] sm:$0xff]
        %v1605 = vld [vmem:[%s1600 + $0x20] sm:$0xff]
        %v1606 = vld [vmem:[%s1600 + $0x28] sm:$0xff]
        %v1607 = vld [vmem:[%s1600 + $0x30] sm:$0xff]
        %v1608 = vld [vmem:[%s1600 + $0x38] sm:$0xff]
        %v1609 = vld [vmem:[%s1600 + $0x40] sm:$0xff]
        %v1610 = vld [vmem:[%s1600 + $0x48] sm:$0xff]
        %v1611 = vld [vmem:[%s1600 + $0x50] sm:$0xff]
        %v1612 = vld [vmem:[%s1600 + $0x58] sm:$0xff]
        %v1613 = vld [vmem:[%s1600 + $0x60] sm:$0xff]
        %v1614 = vld [vmem:[%s1600 + $0x68] sm:$0xff]
        %v1615 = vld [vmem:[%s1600 + $0x70] sm:$0xff]
        %v1616 = vld [vmem:[%s1600 + $0x78] sm:$0xff]
        %v1617 = vld [vmem:[%s1600 + $0x80] sm:$0xff]
        %v1618 = vld [vmem:[%s1600 + $0x88] sm:$0xff]
        %v1619 = vld [vmem:[%s1600 + $0x90] sm:$0xff]
        %v1620 = vld [vmem:[%s1600 + $0x98] sm:$0xff]
        %v1621 = vld [vmem:[%s1600 + $0xa0] sm:$0xff]
        %v1622 = vld [vmem:[%s1600 + $0xa8] sm:$0xff]
        %v1623 = vld [vmem:[%s1600 + $0xb0] sm:$0xff]
        %v1624 = vld [vmem:[%s1600 + $0xb8] sm:$0xff]
        %v1625 = vunpack.c.l.s8.bf16 %v1601
        %v1626 = vunpack.c.l.s8.bf16 %v1602
        %v1627 = vunpack.c.l.s8.bf16 %v1603
        %v1628 = vunpack.c.h.s8.bf16 %v1601
        %v1629 = vunpack.c.h.s8.bf16 %v1602
        %v1630 = vunpack.c.h.s8.bf16 %v1603
        %v1631 = vunpack.c.l.s8.bf16 %v1604
        %v1632 = vunpack.c.l.s8.bf16 %v1605
        %v1633 = vunpack.c.l.s8.bf16 %v1606
        %v1634 = vunpack.c.h.s8.bf16 %v1604
        %v1635 = vunpack.c.h.s8.bf16 %v1605
        %v1636 = vunpack.c.h.s8.bf16 %v1606
        %v1637 = vunpack.c.l.s8.bf16 %v1607
        %v1638 = vunpack.c.l.s8.bf16 %v1608
        %v1639 = vunpack.c.l.s8.bf16 %v1609
        %v1640 = vunpack.c.h.s8.bf16 %v1607
        %v1641 = vunpack.c.h.s8.bf16 %v1608
        %v1642 = vunpack.c.h.s8.bf16 %v1609
        %v1643 = vunpack.c.l.s8.bf16 %v1610
        %v1644 = vunpack.c.l.s8.bf16 %v1611
        %v1645 = vunpack.c.l.s8.bf16 %v1612
        %v1646 = vunpack.c.h.s8.bf16 %v1610
        %v1647 = vunpack.c.h.s8.bf16 %v1611
        %v1648 = vunpack.c.h.s8.bf16 %v1612
        %v1649 = vunpack.c.l.s8.bf16 %v1613
        %v1650 = vunpack.c.l.s8.bf16 %v1614
        %v1651 = vunpack.c.l.s8.bf16 %v1615
        %v1652 = vunpack.c.h.s8.bf16 %v1613
        %v1653 = vunpack.c.h.s8.bf16 %v1614
        %v1654 = vunpack.c.h.s8.bf16 %v1615
        %v1655 = vunpack.c.l.s8.bf16 %v1616
        %v1656 = vunpack.c.l.s8.bf16 %v1617
        %v1657 = vunpack.c.l.s8.bf16 %v1618
        %v1658 = vunpack.c.h.s8.bf16 %v1616
        %v1659 = vunpack.c.h.s8.bf16 %v1617
        %v1660 = vunpack.c.h.s8.bf16 %v1618
        %v1661 = vunpack.c.l.s8.bf16 %v1619
        %v1662 = vunpack.c.l.s8.bf16 %v1620
        %v1663 = vunpack.c.l.s8.bf16 %v1621
        %v1664 = vunpack.c.h.s8.bf16 %v1619
        %v1665 = vunpack.c.h.s8.bf16 %v1620
        %v1666 = vunpack.c.h.s8.bf16 %v1621
        %v1667 = vunpack.c.l.s8.bf16 %v1622
        %v1668 = vunpack.c.l.s8.bf16 %v1623
        %v1669 = vunpack.c.l.s8.bf16 %v1624
        %v1670 = vunpack.c.h.s8.bf16 %v1622
        %v1671 = vunpack.c.h.s8.bf16 %v1623
        %v1672 = vunpack.c.h.s8.bf16 %v1624
        %v1673 = vrot.slane %v582, 7
        %v1674 = vrot.slane %v584, 6
        %v1675 = vsel %vm587, %v1674, %v1673
        %v1676 = vrot.slane %v583, 7
        %v1677 = vrot.slane %v585, 6
        %v1678 = vsel %vm587, %v1677, %v1676
        %v1679 = vpack.c.b16 %v1675, %v1675
        %v1680 = vpack.c.b16 %v1678, %v1678
        %1683 = vmatprep.subr.bf16.mxu0 %v1647
        %1684 = vmatpush1.bf16.msra.mxu0 %v1646
        %1685 = vmatprep.subr.bf16.mxu0 %v1644
        %1686 = vmatpush1.bf16.msra.mxu0 %v1643
        %1687 = vmatprep.subr.bf16.mxu0 %v1641
        %1688 = vmatpush1.bf16.msra.mxu0 %v1640
        %1689 = vmatprep.subr.bf16.mxu0 %v1638
        %1690 = vmatpush1.bf16.msra.mxu0 %v1637
        %1691 = vmatprep.subr.bf16.mxu0 %v1635
        %1692 = vmatpush1.bf16.msra.mxu0 %v1634
        %1693 = vmatprep.subr.bf16.mxu0 %v1632
        %1694 = vmatpush1.bf16.msra.mxu0 %v1631
        %1695 = vmatprep.subr.bf16.mxu0 %v1629
        %1696 = vmatpush1.bf16.msra.mxu0 %v1628
        %1697 = vmatprep.subr.bf16.mxu0 %v1626
        %1698 = vmatpush1.bf16.msra.mxu0 %v1625
        %1699 = vmatprep.subr.bf16.mxu0 %v1671
        %1700 = vmatpush2.bf16.msra.mxu0 %v1670
        %1701 = vmatprep.subr.bf16.mxu0 %v1668
        %1702 = vmatpush2.bf16.msra.mxu0 %v1667
        %1703 = vmatprep.subr.bf16.mxu0 %v1665
        %1704 = vmatpush2.bf16.msra.mxu0 %v1664
        %1705 = vmatprep.subr.bf16.mxu0 %v1662
        %1706 = vmatpush2.bf16.msra.mxu0 %v1661
        %1707 = vmatprep.subr.bf16.mxu0 %v1659
        %1708 = vmatpush2.bf16.msra.mxu0 %v1658
        %1709 = vmatprep.subr.bf16.mxu0 %v1656
        %1710 = vmatpush2.bf16.msra.mxu0 %v1655
        %1711 = vmatprep.subr.bf16.mxu0 %v1653
        %1712 = vmatpush2.bf16.msra.mxu0 %v1652
        %1713 = vmatprep.subr.bf16.mxu0 %v1650
        %1714 = vmatpush2.bf16.msra.mxu0 %v1649
        %1715 = vmatprep.mubr.bf16.mxu0 %v1680
        %1716 = vmatmul.mubr.bf16.gmra.mxu0 %v1679
        %v1717 = vpop.f32.mrf.mxu0
        %v1718 = vadd.f32 0.0, %v1717
        %v1719 = vpop.f32.mrf.mxu0
        %v1720 = vadd.f32 0.0, %v1719
        %v1721 = vpop.f32.mrf.mxu0
        %v1722 = vpop.f32.mrf.mxu0
        %1723 = vdwg.mxu0
        %1724 = vmatprep.subr.bf16.mxu0 0
        %1725 = vmatpush1.bf16.msra.mxu0 %v1648
        %1726 = vmatprep.subr.bf16.mxu0 0
        %1727 = vmatpush1.bf16.msra.mxu0 %v1645
        %1728 = vmatprep.subr.bf16.mxu0 0
        %1729 = vmatpush1.bf16.msra.mxu0 %v1642
        %1730 = vmatprep.subr.bf16.mxu0 0
        %1731 = vmatpush1.bf16.msra.mxu0 %v1639
        %1732 = vmatprep.subr.bf16.mxu0 0
        %1733 = vmatpush1.bf16.msra.mxu0 %v1636
        %1734 = vmatprep.subr.bf16.mxu0 0
        %1735 = vmatpush1.bf16.msra.mxu0 %v1633
        %1736 = vmatprep.subr.bf16.mxu0 0
        %1737 = vmatpush1.bf16.msra.mxu0 %v1630
        %1738 = vmatprep.subr.bf16.mxu0 0
        %1739 = vmatpush1.bf16.msra.mxu0 %v1627
        %1740 = vmatprep.subr.bf16.mxu0 0
        %1741 = vmatpush2.bf16.msra.mxu0 %v1672
        %1742 = vmatprep.subr.bf16.mxu0 0
        %1743 = vmatpush2.bf16.msra.mxu0 %v1669
        %1744 = vmatprep.subr.bf16.mxu0 0
        %1745 = vmatpush2.bf16.msra.mxu0 %v1666
        %1746 = vmatprep.subr.bf16.mxu0 0
        %1747 = vmatpush2.bf16.msra.mxu0 %v1663
        %1748 = vmatprep.subr.bf16.mxu0 0
        %1749 = vmatpush2.bf16.msra.mxu0 %v1660
        %1750 = vmatprep.subr.bf16.mxu0 0
        %1751 = vmatpush2.bf16.msra.mxu0 %v1657
        %1752 = vmatprep.subr.bf16.mxu0 0
        %1753 = vmatpush2.bf16.msra.mxu0 %v1654
        %1754 = vmatprep.subr.bf16.mxu0 0
        %1755 = vmatpush2.bf16.msra.mxu0 %v1651
        %1756 = vmatprep.mubr.bf16.mxu0 %v1680
        %1757 = vmatmul.mubr.bf16.gmra.mxu0 %v1679
        %v1758 = vpop.f32.mrf.mxu0
        %v1759 = vadd.f32 0.0, %v1758
        %v1760 = vpop.f32.mrf.mxu0
        %v1761 = vpop.f32.mrf.mxu0
        %v1762 = vpop.f32.mrf.mxu0
        %1763 = vdwg.mxu0
        %v1764 = vadd.f32 %v1597, %v1718
        %v1765 = vadd.f32 %v1598, %v1720
        %v1766 = vadd.f32 %v1599, %v1759
        %v1767 = vld [vmem:[%s315] sm:$0x7]
        %v1769 = vlaneseq
        %v1770 = vshrl.u32 %v1769, 7
        %v1771 = vsub.s32 0, %v1770
        %v1772 = vrot.slane %v1767, %v1771
        %v1773 = vlaneseq
        %v1774 = vshrl.u32 %v1773, 7
        %v1775 = vsub.s32 1, %v1774
        %v1776 = vrot.slane %v1767, %v1775
        %v1777 = vlaneseq
        %v1778 = vshrl.u32 %v1777, 7
        %v1779 = vsub.s32 2, %v1778
        %v1780 = vrot.slane %v1767, %v1779
        %v1784 = vmul.f32 %v1764, %v1772
        %v1785 = vmul.f32 %v1765, %v1776
        %v1786 = vmul.f32 %v1766, %v1780
        %v1787 = vld [vmem:[%s324] sm:$0x7]
        %v1789 = vlaneseq
        %v1790 = vshrl.u32 %v1789, 7
        %v1791 = vsub.s32 0, %v1790
        %v1792 = vrot.slane %v1787, %v1791
        %v1793 = vlaneseq
        %v1794 = vshrl.u32 %v1793, 7
        %v1795 = vsub.s32 1, %v1794
        %v1796 = vrot.slane %v1787, %v1795
        %v1797 = vlaneseq
        %v1798 = vshrl.u32 %v1797, 7
        %v1799 = vsub.s32 2, %v1798
        %v1800 = vrot.slane %v1787, %v1799
        %v1804 = vadd.f32 %v1784, %v1792
        %v1805 = vadd.f32 %v1785, %v1796
        %v1806 = vadd.f32 %v1786, %v1800
        %v1810 = vcombine.low %v1804, %v1805
        %v1812 = vunpack.c.l.s4 1983009808
        %v1813 = vunpack.c.0.s8 %v1812
        %v1814 = vlaneseq
        %v1815 = vshrl.u32 %v1814, 7
        %v1816 = vsub.s32 %v1813, %v1815
        %v1817 = vrot.slane %v1810, %v1816
        %v1819 = vunpack.c.l.s4 1983009808
        %v1820 = vunpack.c.0.s8 %v1819
        %v1821 = vlaneseq
        %v1822 = vshrl.u32 %v1821, 7
        %v1823 = vsub.s32 %v1820, %v1822
        %v1824 = vrot.slane %v1806, %v1823
        %v1825 = vcombine.low %v1817, %v1824
        %1827 = vst [vmem:[%s362] sm:$0x3f] %v1825
        %s1828 = sand.u32 %s171, 1
        %s1829 = scalar_lea.sflag [#allocation4], %s1828
        %s1830 = sand.u32 %s171, 1
        %s1831 = smul.addr %s1830, 6
        %s1832 = scalar_lea.vmem [#allocation10], %s1831
        // Predicated region
        $region65: #{bottleneck_in_forward.1} parent=43 // pred_check
          %p1833 = pneg %p181
        $region66: #{bottleneck_in_forward.1} parent=43 // pred_check_branch
          %1835 = sbr.rel (%p1833) target = $region68
        $region67: #{bottleneck_in_forward.1} parent=43 // pred_region
          %s1836 = smul.u32 3, %s22
          %s1838 = ssub.s32 96, 96
          %1839 = vsyncadd %s1829, %s1838
          %s1840 = smul.addr %s1836, 32
          %s1841 = scalar_lea.hbm %s6, %s1840
          %s1843 = sshll.u32 %s1832, 4
          %s1844 = int_to_ptr.vmem [resolvable:$true] %s1843
          %1846 = dma.vmem_to_hbm [thread:$0]  %s1844, 96, %s1841, %s1829
        $region68: #{bottleneck_in_forward.1} parent=43 // pred_fallthru
          _
      $region44: #{bottleneck_in_forward.1} parent=5 // pred_fallthru
        _
      %p1847 = scmp.le.s32.totalorder 2, %s17
      // Predicated region
      $region69: #{bottleneck_in_forward.1} parent=5 // pred_check
        %p1848 = pneg %p1847
      $region70: #{bottleneck_in_forward.1} parent=5 // pred_check_branch
        %1850 = sbr.rel (%p1848) target = $region72
      $region71: #{bottleneck_in_forward.1} parent=5 // pred_region
        %s1851 = ssub.s32 %s17, 2
        // Predicated region
        $region73: #{bottleneck_in_forward.1} parent=71 // pred_check
          %p1852 = pneg %p187
        $region74: #{bottleneck_in_forward.1} parent=71 // pred_check_branch
          %1854 = sbr.rel (%p1852) target = $region76
        $region75: #{bottleneck_in_forward.1} parent=71 // pred_region
          %s1855 = sand.u32 %s172, 1
          %s1856 = scalar_lea.sflag [#allocation4], %s1855
          %s1857 = sand.u32 %s172, 1
          %s1858 = smul.addr %s1857, 6
          %s1859 = scalar_lea.vmem [#allocation10], %s1858
          %1860 = dma.done %s1856, 96
        $region76: #{bottleneck_in_forward.1} parent=71 // pred_fallthru
          _
      $region72: #{bottleneck_in_forward.1} parent=5 // pred_fallthru
        _
    $region6: #{bottleneck_in_forward.1} parent=1 // loop_footer
      %s21 = sadd.s32 1, %s17
    $region7: #{bottleneck_in_forward.1} parent=1 // loop_footer_branch
      %16 = sbr.rel target = $region3
    $region8: #{bottleneck_in_forward.1} parent=1 // loop_exit
      _
    %1861 = vsyncpa [#allocation3], 1
    %s1862 = scalar_lea.sflag [#allocation3], 1
    %1863 = vsyncpa %s1862, 1
    %1864 = vsyncpa [#allocation6], 1
    %1865 = vsyncpa [#allocation4], 1
    %s1866 = scalar_lea.sflag [#allocation4], 1
    %1867 = vsyncpa %s1866, 1

</llo_original>
